<compile_context>
chip_gen: v7x
topology: tpu7x:2x2x1
jax: 0.10.0
libtpu: 0.0.40
codegen_flags: <defaults>
</compile_context>

<pallas_src>
from functools import partial
import math

import jax
import jax.numpy as jnp
from jax.experimental import pallas as pl
from jax.experimental.pallas import tpu as pltpu


def encoder_layer_kernel(xq_ref, xkv_ref, mask_ref,
                         ln1_a_ref, ln1_b_ref,
                         wq_ref, bq_ref, wk_ref, bk_ref, wv_ref, bv_ref,
                         wo_ref, bo_ref,
                         ln2_a_ref, ln2_b_ref,
                         w1_ref, b1_ref, w2_ref, b2_ref,
                         o_ref, *, num_heads, eps):
    xq = xq_ref[0]            # (TQ, D)  query rows (also the residual stream)
    xkv = xkv_ref[0]          # (S, D)   full sequence for keys / values
    mask_row = mask_ref[0]    # (1, S)

    TQ, D = xq.shape
    dk = D // num_heads
    inv_sqrt_dk = 1.0 / math.sqrt(dk)

    def layer_norm(v, a_ref, b_ref):
        mean = jnp.mean(v, axis=-1, keepdims=True)
        # torch.Tensor.std() uses Bessel's correction (ddof=1)
        var = jnp.sum((v - mean) ** 2, axis=-1, keepdims=True) * (1.0 / (D - 1))
        z = (v - mean) * jax.lax.rsqrt(var + eps)          # rsqrt -> EUP slot
        return a_ref[...] * z + b_ref[...]

    # ---------------- sublayer 0: multi-head self-attention ----------------
    hq = layer_norm(xq, ln1_a_ref, ln1_b_ref)              # (TQ, D) f32
    hkv = layer_norm(xkv, ln1_a_ref, ln1_b_ref)            # (S, D)  f32

    hq_b = hq.astype(jnp.bfloat16)
    hkv_b = hkv.astype(jnp.bfloat16)

    q = jnp.dot(hq_b, wq_ref[...], preferred_element_type=jnp.float32) + bq_ref[...]
    k = jnp.dot(hkv_b, wk_ref[...], preferred_element_type=jnp.float32) + bk_ref[...]
    v = jnp.dot(hkv_b, wv_ref[...], preferred_element_type=jnp.float32) + bv_ref[...]

    # Hoisted invariants: fold 1/sqrt(dk) into q once, build additive mask bias once.
    q = q * jnp.float32(inv_sqrt_dk)
    mask_bias = jnp.where(mask_row == 0.0,
                          jnp.float32(-1e9), jnp.float32(0.0))   # (1, S)

    q_b = q.astype(jnp.bfloat16)
    k_b = k.astype(jnp.bfloat16)
    v_b = v.astype(jnp.bfloat16)
    wo = wo_ref[...]                                        # (D, D) bf16

    # Fuse the head-concat into the output projection: attn += (p_h @ v_h) @ Wo[h].
    attn = jnp.zeros((TQ, D), jnp.float32)
    # TODO(synk): for long S, switch to flash-style KV tiling (online-softmax
    # scratch) instead of materializing the (TQ, S) score matrix per head.
    for h in range(num_heads):
        lo = h * dk
        sc = jax.lax.dot_general(                           # q_h @ k_h^T -> (TQ, S)
            q_b[:, lo:lo + dk], k_b[:, lo:lo + dk],
            (((1,), (1,)), ((), ())),
            preferred_element_type=jnp.float32)
        sc = sc + mask_bias
        sc = sc - jnp.max(sc, axis=-1, keepdims=True)
        p = jnp.exp(sc)
        p = p * pl.reciprocal(jnp.sum(p, axis=-1, keepdims=True), approx=True)
        ph = jnp.dot(p.astype(jnp.bfloat16), v_b[:, lo:lo + dk],
                     preferred_element_type=jnp.float32)    # (TQ, dk)
        attn = attn + jnp.dot(ph.astype(jnp.bfloat16), wo[lo:lo + dk, :],
                              preferred_element_type=jnp.float32)

    x1 = xq + attn + bo_ref[...]        # dropout(p=0) == identity

    # ---------------- sublayer 1: position-wise feed-forward ----------------
    h2 = layer_norm(x1, ln2_a_ref, ln2_b_ref)
    ff = jnp.dot(h2.astype(jnp.bfloat16), w1_ref[...],
                 preferred_element_type=jnp.float32) + b1_ref[...]
    ff = jnp.maximum(ff, 0.0)
    ff = jnp.dot(ff.astype(jnp.bfloat16), w2_ref[...],
                 preferred_element_type=jnp.float32) + b2_ref[...]

    o_ref[0] = (x1 + ff).astype(o_ref.dtype)


def encoder_layer(x, mask, params, *, num_heads, eps=1e-6, q_tile=256):
    B, S, D = x.shape
    d_ff = params["w1"].shape[1]
    assert D % num_heads == 0

    # Query-row tile: up to 256 rows per grid step (MXU-friendly); clamp to S
    # for short sequences. Block's second-to-last dim must be S or a multiple of 8.
    TQ = min(q_tile, S)
    if TQ != S:
        TQ = max(8, (TQ // 8) * 8)
    n_qt = pl.cdiv(S, TQ)

    # Weights in bf16 (MXU-native, half the VMEM/HBM traffic); biases/LN in f32.
    bf16 = jnp.bfloat16
    wq = params["wq"].astype(bf16)
    wk = params["wk"].astype(bf16)
    wv = params["wv"].astype(bf16)
    wo = params["wo"].astype(bf16)
    w1 = params["w1"].astype(bf16)
    w2 = params["w2"].astype(bf16)

    def resident(shape):
        zeros = (0,) * len(shape)
        return pl.BlockSpec(shape, lambda b, qi: zeros)

    in_specs = [
        pl.BlockSpec((1, TQ, D), lambda b, qi: (b, qi, 0)),   # x (query rows / residual)
        pl.BlockSpec((1, S, D), lambda b, qi: (b, 0, 0)),     # x (full seq for K/V)
        pl.BlockSpec((1, 1, S), lambda b, qi: (b, 0, 0)),     # mask
        resident((1, D)), resident((1, D)),                   # ln1 a, b
        resident((D, D)), resident((1, D)),                   # Wq, bq
        resident((D, D)), resident((1, D)),                   # Wk, bk
        resident((D, D)), resident((1, D)),                   # Wv, bv
        resident((D, D)), resident((1, D)),                   # Wo, bo
        resident((1, D)), resident((1, D)),                   # ln2 a, b
        resident((D, d_ff)), resident((1, d_ff)),             # W1, b1
        resident((d_ff, D)), resident((1, D)),                # W2, b2
    ]

    kernel = partial(encoder_layer_kernel, num_heads=num_heads, eps=eps)
    return pl.pallas_call(
        kernel,
        out_shape=jax.ShapeDtypeStruct((B, S, D), x.dtype),
        grid=(B, n_qt),
        in_specs=in_specs,
        out_specs=pl.BlockSpec((1, TQ, D), lambda b, qi: (b, qi, 0)),
        compiler_params=pltpu.CompilerParams(
            dimension_semantics=("parallel", "parallel"),
            vmem_limit_bytes=64 * 1024 * 1024,
        ),
    )(x, x, mask,
      params["ln1_a"], params["ln1_b"],
      wq, params["bq"], wk, params["bk"], wv, params["bv"],
      wo, params["bo"],
      params["ln2_a"], params["ln2_b"],
      w1, params["b1"], w2, params["b2"])


# ----------------------------- pure-JAX reference -----------------------------
def encoder_layer_ref(x, mask, params, *, num_heads, eps=1e-6):
    B, S, D = x.shape
    dk = D // num_heads

    def ln(v, a, b):
        mean = jnp.mean(v, axis=-1, keepdims=True)
        var = jnp.sum((v - mean) ** 2, axis=-1, keepdims=True) / (D - 1)
        return a[0] * (v - mean) / jnp.sqrt(var + eps) + b[0]

    h = ln(x, params["ln1_a"], params["ln1_b"])
    q = h @ params["wq"] + params["bq"][0]
    k = h @ params["wk"] + params["bk"][0]
    v = h @ params["wv"] + params["bv"][0]
    q = q.reshape(B, S, num_heads, dk).transpose(0, 2, 1, 3)
    k = k.reshape(B, S, num_heads, dk).transpose(0, 2, 1, 3)
    v = v.reshape(B, S, num_heads, dk).transpose(0, 2, 1, 3)
    sc = jnp.einsum("bhqd,bhkd->bhqk", q, k) / jnp.sqrt(jnp.float32(dk))
    sc = jnp.where(mask[:, None, :, :] == 0, -1e9, sc)
    p = jax.nn.softmax(sc, axis=-1)
    attn = jnp.einsum("bhqk,bhkd->bhqd", p, v).transpose(0, 2, 1, 3).reshape(B, S, D)
    x1 = x + (attn @ params["wo"] + params["bo"][0])
    h2 = ln(x1, params["ln2_a"], params["ln2_b"])
    ff = jnp.maximum(h2 @ params["w1"] + params["b1"][0], 0.0) @ params["w2"] + params["b2"][0]
    return x1 + ff


if __name__ == "__main__":
    B, S, D, H, DFF = 2, 8, 32, 4, 64

    key = jax.random.PRNGKey(0)
    keys = jax.random.split(key, 12)
    scale = 0.05
    params = {
        "ln1_a": jnp.ones((1, D), jnp.float32),
        "ln1_b": jnp.zeros((1, D), jnp.float32),
        "wq": scale * jax.random.normal(keys[0], (D, D), jnp.float32),
        "bq": scale * jax.random.normal(keys[1], (1, D), jnp.float32),
        "wk": scale * jax.random.normal(keys[2], (D, D), jnp.float32),
        "bk": scale * jax.random.normal(keys[3], (1, D), jnp.float32),
        "wv": scale * jax.random.normal(keys[4], (D, D), jnp.float32),
        "bv": scale * jax.random.normal(keys[5], (1, D), jnp.float32),
        "wo": scale * jax.random.normal(keys[6], (D, D), jnp.float32),
        "bo": scale * jax.random.normal(keys[7], (1, D), jnp.float32),
        "ln2_a": jnp.ones((1, D), jnp.float32),
        "ln2_b": jnp.zeros((1, D), jnp.float32),
        "w1": scale * jax.random.normal(keys[8], (D, DFF), jnp.float32),
        "b1": scale * jax.random.normal(keys[9], (1, DFF), jnp.float32),
        "w2": scale * jax.random.normal(keys[10], (DFF, D), jnp.float32),
        "b2": scale * jax.random.normal(keys[11], (1, D), jnp.float32),
    }

    xkey, _ = jax.random.split(key)
    x = jax.random.normal(xkey, (B, S, D), jnp.float32)
    # mask: [B, 1, S], 1 = attend, 0 = masked (second sequence padded at the end)
    lengths = jnp.array([S, 5])
    mask = (jnp.arange(S)[None, None, :] < lengths[:, None, None]).astype(jnp.float32)

    out = encoder_layer(x, mask, params, num_heads=H)
    out = jax.block_until_ready(out)

    ref = encoder_layer_ref(x, mask, params, num_heads=H)
    assert out.shape == (B, S, D)
    # bf16 matmul operands + approx reciprocal -> slightly looser tolerance vs f32 reference
    assert jnp.allclose(out, ref, atol=2e-2, rtol=2e-2)

    print("KERNEL_OK")
</pallas_src>

<mosaic_0001>
module attributes {stable_mosaic.version = 11 : i64} {
  func.func @encoder_layer_kernel(%arg0: i32, %arg1: i32, %arg2: memref<1x8x32xf32, #tpu.memory_space<vmem>>, %arg3: memref<1x8x32xf32, #tpu.memory_space<vmem>>, %arg4: memref<1x1x8xf32, #tpu.memory_space<vmem>>, %arg5: memref<1x32xf32, #tpu.memory_space<vmem>>, %arg6: memref<1x32xf32, #tpu.memory_space<vmem>>, %arg7: memref<32x32xbf16, #tpu.memory_space<vmem>>, %arg8: memref<1x32xf32, #tpu.memory_space<vmem>>, %arg9: memref<32x32xbf16, #tpu.memory_space<vmem>>, %arg10: memref<1x32xf32, #tpu.memory_space<vmem>>, %arg11: memref<32x32xbf16, #tpu.memory_space<vmem>>, %arg12: memref<1x32xf32, #tpu.memory_space<vmem>>, %arg13: memref<32x32xbf16, #tpu.memory_space<vmem>>, %arg14: memref<1x32xf32, #tpu.memory_space<vmem>>, %arg15: memref<1x32xf32, #tpu.memory_space<vmem>>, %arg16: memref<1x32xf32, #tpu.memory_space<vmem>>, %arg17: memref<32x64xbf16, #tpu.memory_space<vmem>>, %arg18: memref<1x64xf32, #tpu.memory_space<vmem>>, %arg19: memref<64x32xbf16, #tpu.memory_space<vmem>>, %arg20: memref<1x32xf32, #tpu.memory_space<vmem>>, %arg21: memref<1x8x32xf32, #tpu.memory_space<vmem>>) attributes {dimension_semantics = [#tpu.dimension_semantics<parallel>, #tpu.dimension_semantics<parallel>], iteration_bounds = array<i64: 2, 1>, scalar_prefetch = 0 : i64, scratch_operands = 0 : i64, tpu.core_type = #tpu.core_type<tc>, window_params = [{transform_indices = @transform_0, window_bounds = array<i64: 1, 8, 32>}, {transform_indices = @transform_1, window_bounds = array<i64: 1, 8, 32>}, {transform_indices = @transform_2, window_bounds = array<i64: 1, 1, 8>}, {pipeline_mode = #tpu.pipeline_mode<synchronous>, transform_indices = @transform_3, window_bounds = array<i64: 1, 32>}, {pipeline_mode = #tpu.pipeline_mode<synchronous>, transform_indices = @transform_4, window_bounds = array<i64: 1, 32>}, {pipeline_mode = #tpu.pipeline_mode<synchronous>, transform_indices = @transform_5, window_bounds = array<i64: 32, 32>}, {pipeline_mode = #tpu.pipeline_mode<synchronous>, transform_indices = @transform_6, window_bounds = array<i64: 1, 32>}, {pipeline_mode = #tpu.pipeline_mode<synchronous>, transform_indices = @transform_7, window_bounds = array<i64: 32, 32>}, {pipeline_mode = #tpu.pipeline_mode<synchronous>, transform_indices = @transform_8, window_bounds = array<i64: 1, 32>}, {pipeline_mode = #tpu.pipeline_mode<synchronous>, transform_indices = @transform_9, window_bounds = array<i64: 32, 32>}, {pipeline_mode = #tpu.pipeline_mode<synchronous>, transform_indices = @transform_10, window_bounds = array<i64: 1, 32>}, {pipeline_mode = #tpu.pipeline_mode<synchronous>, transform_indices = @transform_11, window_bounds = array<i64: 32, 32>}, {pipeline_mode = #tpu.pipeline_mode<synchronous>, transform_indices = @transform_12, window_bounds = array<i64: 1, 32>}, {pipeline_mode = #tpu.pipeline_mode<synchronous>, transform_indices = @transform_13, window_bounds = array<i64: 1, 32>}, {pipeline_mode = #tpu.pipeline_mode<synchronous>, transform_indices = @transform_14, window_bounds = array<i64: 1, 32>}, {pipeline_mode = #tpu.pipeline_mode<synchronous>, transform_indices = @transform_15, window_bounds = array<i64: 32, 64>}, {pipeline_mode = #tpu.pipeline_mode<synchronous>, transform_indices = @transform_16, window_bounds = array<i64: 1, 64>}, {pipeline_mode = #tpu.pipeline_mode<synchronous>, transform_indices = @transform_17, window_bounds = array<i64: 64, 32>}, {pipeline_mode = #tpu.pipeline_mode<synchronous>, transform_indices = @transform_18, window_bounds = array<i64: 1, 32>}, {transform_indices = @transform_19, window_bounds = array<i64: 1, 8, 32>}]} {
    %c0 = arith.constant 0 : index
    %c0_0 = arith.constant 0 : index
    %c0_1 = arith.constant 0 : index
    %0 = vector.load %arg2[%c0, %c0_0, %c0_1] : memref<1x8x32xf32, #tpu.memory_space<vmem>>, vector<1x8x32xf32>
    %1 = vector.shape_cast %0 : vector<1x8x32xf32> to vector<8x32xf32>
    %c0_2 = arith.constant 0 : index
    %c0_3 = arith.constant 0 : index
    %c0_4 = arith.constant 0 : index
    %2 = vector.load %arg3[%c0_2, %c0_3, %c0_4] : memref<1x8x32xf32, #tpu.memory_space<vmem>>, vector<1x8x32xf32>
    %3 = vector.shape_cast %2 : vector<1x8x32xf32> to vector<8x32xf32>
    %c0_5 = arith.constant 0 : index
    %c0_6 = arith.constant 0 : index
    %c0_7 = arith.constant 0 : index
    %4 = vector.load %arg4[%c0_5, %c0_6, %c0_7] : memref<1x1x8xf32, #tpu.memory_space<vmem>>, vector<1x1x8xf32>
    %5 = vector.shape_cast %4 : vector<1x1x8xf32> to vector<1x8xf32>
    %cst = arith.constant dense<0.000000e+00> : vector<8xf32>
    %6 = vector.multi_reduction <add>, %1, %cst [1] : vector<8x32xf32> to vector<8xf32>
    %7 = vector.shape_cast %6 : vector<8xf32> to vector<8x1xf32>
    %cst_8 = arith.constant 3.200000e+01 : f32
    %8 = vector.broadcast %cst_8 : f32 to vector<8x1xf32>
    %9 = arith.divf %7, %8 : vector<8x1xf32>
    %10 = vector.broadcast %9 : vector<8x1xf32> to vector<8x32xf32>
    %11 = arith.subf %1, %10 : vector<8x32xf32>
    %12 = arith.mulf %11, %11 : vector<8x32xf32>
    %cst_9 = arith.constant dense<0.000000e+00> : vector<8xf32>
    %13 = vector.multi_reduction <add>, %12, %cst_9 [1] : vector<8x32xf32> to vector<8xf32>
    %14 = vector.shape_cast %13 : vector<8xf32> to vector<8x1xf32>
    %cst_10 = arith.constant 0.0322580636 : f32
    %15 = vector.broadcast %cst_10 : f32 to vector<8x1xf32>
    %16 = arith.mulf %14, %15 : vector<8x1xf32>
    %17 = vector.broadcast %9 : vector<8x1xf32> to vector<8x32xf32>
    %18 = arith.subf %1, %17 : vector<8x32xf32>
    %cst_11 = arith.constant 9.99999997E-7 : f32
    %19 = vector.broadcast %cst_11 : f32 to vector<8x1xf32>
    %20 = arith.addf %16, %19 : vector<8x1xf32>
    %21 = math.rsqrt %20 : vector<8x1xf32>
    %22 = vector.broadcast %21 : vector<8x1xf32> to vector<8x32xf32>
    %23 = arith.mulf %18, %22 : vector<8x32xf32>
    %c0_12 = arith.constant 0 : index
    %c0_13 = arith.constant 0 : index
    %24 = vector.load %arg5[%c0_12, %c0_13] : memref<1x32xf32, #tpu.memory_space<vmem>>, vector<1x32xf32>
    %25 = vector.broadcast %24 : vector<1x32xf32> to vector<8x32xf32>
    %26 = arith.mulf %25, %23 : vector<8x32xf32>
    %c0_14 = arith.constant 0 : index
    %c0_15 = arith.constant 0 : index
    %27 = vector.load %arg6[%c0_14, %c0_15] : memref<1x32xf32, #tpu.memory_space<vmem>>, vector<1x32xf32>
    %28 = vector.broadcast %27 : vector<1x32xf32> to vector<8x32xf32>
    %29 = arith.addf %26, %28 : vector<8x32xf32>
    %cst_16 = arith.constant dense<0.000000e+00> : vector<8xf32>
    %30 = vector.multi_reduction <add>, %3, %cst_16 [1] : vector<8x32xf32> to vector<8xf32>
    %31 = vector.shape_cast %30 : vector<8xf32> to vector<8x1xf32>
    %cst_17 = arith.constant 3.200000e+01 : f32
    %32 = vector.broadcast %cst_17 : f32 to vector<8x1xf32>
    %33 = arith.divf %31, %32 : vector<8x1xf32>
    %34 = vector.broadcast %33 : vector<8x1xf32> to vector<8x32xf32>
    %35 = arith.subf %3, %34 : vector<8x32xf32>
    %36 = arith.mulf %35, %35 : vector<8x32xf32>
    %cst_18 = arith.constant dense<0.000000e+00> : vector<8xf32>
    %37 = vector.multi_reduction <add>, %36, %cst_18 [1] : vector<8x32xf32> to vector<8xf32>
    %38 = vector.shape_cast %37 : vector<8xf32> to vector<8x1xf32>
    %cst_19 = arith.constant 0.0322580636 : f32
    %39 = vector.broadcast %cst_19 : f32 to vector<8x1xf32>
    %40 = arith.mulf %38, %39 : vector<8x1xf32>
    %41 = vector.broadcast %33 : vector<8x1xf32> to vector<8x32xf32>
    %42 = arith.subf %3, %41 : vector<8x32xf32>
    %cst_20 = arith.constant 9.99999997E-7 : f32
    %43 = vector.broadcast %cst_20 : f32 to vector<8x1xf32>
    %44 = arith.addf %40, %43 : vector<8x1xf32>
    %45 = math.rsqrt %44 : vector<8x1xf32>
    %46 = vector.broadcast %45 : vector<8x1xf32> to vector<8x32xf32>
    %47 = arith.mulf %42, %46 : vector<8x32xf32>
    %c0_21 = arith.constant 0 : index
    %c0_22 = arith.constant 0 : index
    %48 = vector.load %arg5[%c0_21, %c0_22] : memref<1x32xf32, #tpu.memory_space<vmem>>, vector<1x32xf32>
    %49 = vector.broadcast %48 : vector<1x32xf32> to vector<8x32xf32>
    %50 = arith.mulf %49, %47 : vector<8x32xf32>
    %c0_23 = arith.constant 0 : index
    %c0_24 = arith.constant 0 : index
    %51 = vector.load %arg6[%c0_23, %c0_24] : memref<1x32xf32, #tpu.memory_space<vmem>>, vector<1x32xf32>
    %52 = vector.broadcast %51 : vector<1x32xf32> to vector<8x32xf32>
    %53 = arith.addf %50, %52 : vector<8x32xf32>
    %54 = arith.truncf %29 : vector<8x32xf32> to vector<8x32xbf16>
    %55 = arith.truncf %53 : vector<8x32xf32> to vector<8x32xbf16>
    %c0_25 = arith.constant 0 : index
    %c0_26 = arith.constant 0 : index
    %56 = vector.load %arg7[%c0_25, %c0_26] : memref<32x32xbf16, #tpu.memory_space<vmem>>, vector<32x32xbf16>
    %cst_27 = arith.constant dense<0.000000e+00> : vector<8x32xf32>
    %57 = tpu.matmul %54, %56, %cst_27 {dimension_numbers = #tpu.dot_dimension_numbers<[1], [0], [0], [1], [0, 0, 1, 1], [], []>} : vector<8x32xbf16>, vector<32x32xbf16>, vector<8x32xf32> -> vector<8x32xf32>
    %c0_28 = arith.constant 0 : index
    %c0_29 = arith.constant 0 : index
    %58 = vector.load %arg8[%c0_28, %c0_29] : memref<1x32xf32, #tpu.memory_space<vmem>>, vector<1x32xf32>
    %59 = vector.broadcast %58 : vector<1x32xf32> to vector<8x32xf32>
    %60 = arith.addf %57, %59 : vector<8x32xf32>
    %c0_30 = arith.constant 0 : index
    %c0_31 = arith.constant 0 : index
    %61 = vector.load %arg9[%c0_30, %c0_31] : memref<32x32xbf16, #tpu.memory_space<vmem>>, vector<32x32xbf16>
    %cst_32 = arith.constant dense<0.000000e+00> : vector<8x32xf32>
    %62 = tpu.matmul %55, %61, %cst_32 {dimension_numbers = #tpu.dot_dimension_numbers<[1], [0], [0], [1], [0, 0, 1, 1], [], []>} : vector<8x32xbf16>, vector<32x32xbf16>, vector<8x32xf32> -> vector<8x32xf32>
    %c0_33 = arith.constant 0 : index
    %c0_34 = arith.constant 0 : index
    %63 = vector.load %arg10[%c0_33, %c0_34] : memref<1x32xf32, #tpu.memory_space<vmem>>, vector<1x32xf32>
    %64 = vector.broadcast %63 : vector<1x32xf32> to vector<8x32xf32>
    %65 = arith.addf %62, %64 : vector<8x32xf32>
    %c0_35 = arith.constant 0 : index
    %c0_36 = arith.constant 0 : index
    %66 = vector.load %arg11[%c0_35, %c0_36] : memref<32x32xbf16, #tpu.memory_space<vmem>>, vector<32x32xbf16>
    %cst_37 = arith.constant dense<0.000000e+00> : vector<8x32xf32>
    %67 = tpu.matmul %55, %66, %cst_37 {dimension_numbers = #tpu.dot_dimension_numbers<[1], [0], [0], [1], [0, 0, 1, 1], [], []>} : vector<8x32xbf16>, vector<32x32xbf16>, vector<8x32xf32> -> vector<8x32xf32>
    %c0_38 = arith.constant 0 : index
    %c0_39 = arith.constant 0 : index
    %68 = vector.load %arg12[%c0_38, %c0_39] : memref<1x32xf32, #tpu.memory_space<vmem>>, vector<1x32xf32>
    %69 = vector.broadcast %68 : vector<1x32xf32> to vector<8x32xf32>
    %70 = arith.addf %67, %69 : vector<8x32xf32>
    %cst_40 = arith.constant 0.353553385 : f32
    %71 = vector.broadcast %cst_40 : f32 to vector<8x32xf32>
    %72 = arith.mulf %60, %71 : vector<8x32xf32>
    %cst_41 = arith.constant 0.000000e+00 : f32
    %73 = vector.broadcast %cst_41 : f32 to vector<1x8xf32>
    %74 = arith.cmpf oeq, %5, %73 : vector<1x8xf32>
    %cst_42 = arith.constant -1.000000e+09 : f32
    %cst_43 = arith.constant 0.000000e+00 : f32
    %75 = vector.broadcast %cst_42 : f32 to vector<1x8xf32>
    %76 = vector.broadcast %cst_43 : f32 to vector<1x8xf32>
    %77 = arith.select %74, %75, %76 : vector<1x8xi1>, vector<1x8xf32>
    %78 = arith.truncf %72 : vector<8x32xf32> to vector<8x32xbf16>
    %79 = arith.truncf %65 : vector<8x32xf32> to vector<8x32xbf16>
    %80 = arith.truncf %70 : vector<8x32xf32> to vector<8x32xbf16>
    %c0_44 = arith.constant 0 : index
    %c0_45 = arith.constant 0 : index
    %81 = vector.load %arg13[%c0_44, %c0_45] : memref<32x32xbf16, #tpu.memory_space<vmem>>, vector<32x32xbf16>
    %cst_46 = arith.constant 0.000000e+00 : f32
    %82 = vector.broadcast %cst_46 : f32 to vector<8x32xf32>
    %83 = vector.extract_strided_slice %78 {offsets = [0, 0], sizes = [8, 8], strides = [1, 1]} : vector<8x32xbf16> to vector<8x8xbf16>
    %84 = vector.extract_strided_slice %79 {offsets = [0, 0], sizes = [8, 8], strides = [1, 1]} : vector<8x32xbf16> to vector<8x8xbf16>
    %cst_47 = arith.constant dense<0.000000e+00> : vector<8x8xf32>
    %85 = tpu.matmul %83, %84, %cst_47 {dimension_numbers = #tpu.dot_dimension_numbers<[1], [1], [0], [0], [0, 0, 1, 0], [], []>} : vector<8x8xbf16>, vector<8x8xbf16>, vector<8x8xf32> -> vector<8x8xf32>
    %86 = vector.broadcast %77 : vector<1x8xf32> to vector<8x8xf32>
    %87 = arith.addf %85, %86 : vector<8x8xf32>
    %cst_48 = arith.constant dense<0xFF800000> : vector<8xf32>
    %88 = vector.multi_reduction <maximumf>, %87, %cst_48 [1] : vector<8x8xf32> to vector<8xf32>
    %89 = vector.shape_cast %88 : vector<8xf32> to vector<8x1xf32>
    %90 = vector.broadcast %89 : vector<8x1xf32> to vector<8x8xf32>
    %91 = arith.subf %87, %90 : vector<8x8xf32>
    %92 = math.exp %91 : vector<8x8xf32>
    %cst_49 = arith.constant dense<0.000000e+00> : vector<8xf32>
    %93 = vector.multi_reduction <add>, %92, %cst_49 [1] : vector<8x8xf32> to vector<8xf32>
    %94 = vector.shape_cast %93 : vector<8xf32> to vector<8x1xf32>
    %95 = tpu.reciprocal %94 {approx = true} : vector<8x1xf32> -> vector<8x1xf32>
    %96 = vector.broadcast %95 : vector<8x1xf32> to vector<8x8xf32>
    %97 = arith.mulf %92, %96 : vector<8x8xf32>
    %98 = arith.truncf %97 : vector<8x8xf32> to vector<8x8xbf16>
    %99 = vector.extract_strided_slice %80 {offsets = [0, 0], sizes = [8, 8], strides = [1, 1]} : vector<8x32xbf16> to vector<8x8xbf16>
    %cst_50 = arith.constant dense<0.000000e+00> : vector<8x8xf32>
    %100 = tpu.matmul %98, %99, %cst_50 {dimension_numbers = #tpu.dot_dimension_numbers<[1], [0], [0], [1], [0, 0, 1, 1], [], []>} : vector<8x8xbf16>, vector<8x8xbf16>, vector<8x8xf32> -> vector<8x8xf32>
    %101 = arith.truncf %100 : vector<8x8xf32> to vector<8x8xbf16>
    %102 = vector.extract_strided_slice %81 {offsets = [0, 0], sizes = [8, 32], strides = [1, 1]} : vector<32x32xbf16> to vector<8x32xbf16>
    %cst_51 = arith.constant dense<0.000000e+00> : vector<8x32xf32>
    %103 = tpu.matmul %101, %102, %cst_51 {dimension_numbers = #tpu.dot_dimension_numbers<[1], [0], [0], [1], [0, 0, 1, 1], [], []>} : vector<8x8xbf16>, vector<8x32xbf16>, vector<8x32xf32> -> vector<8x32xf32>
    %104 = arith.addf %82, %103 : vector<8x32xf32>
    %105 = vector.extract_strided_slice %78 {offsets = [0, 8], sizes = [8, 8], strides = [1, 1]} : vector<8x32xbf16> to vector<8x8xbf16>
    %106 = vector.extract_strided_slice %79 {offsets = [0, 8], sizes = [8, 8], strides = [1, 1]} : vector<8x32xbf16> to vector<8x8xbf16>
    %cst_52 = arith.constant dense<0.000000e+00> : vector<8x8xf32>
    %107 = tpu.matmul %105, %106, %cst_52 {dimension_numbers = #tpu.dot_dimension_numbers<[1], [1], [0], [0], [0, 0, 1, 0], [], []>} : vector<8x8xbf16>, vector<8x8xbf16>, vector<8x8xf32> -> vector<8x8xf32>
    %108 = vector.broadcast %77 : vector<1x8xf32> to vector<8x8xf32>
    %109 = arith.addf %107, %108 : vector<8x8xf32>
    %cst_53 = arith.constant dense<0xFF800000> : vector<8xf32>
    %110 = vector.multi_reduction <maximumf>, %109, %cst_53 [1] : vector<8x8xf32> to vector<8xf32>
    %111 = vector.shape_cast %110 : vector<8xf32> to vector<8x1xf32>
    %112 = vector.broadcast %111 : vector<8x1xf32> to vector<8x8xf32>
    %113 = arith.subf %109, %112 : vector<8x8xf32>
    %114 = math.exp %113 : vector<8x8xf32>
    %cst_54 = arith.constant dense<0.000000e+00> : vector<8xf32>
    %115 = vector.multi_reduction <add>, %114, %cst_54 [1] : vector<8x8xf32> to vector<8xf32>
    %116 = vector.shape_cast %115 : vector<8xf32> to vector<8x1xf32>
    %117 = tpu.reciprocal %116 {approx = true} : vector<8x1xf32> -> vector<8x1xf32>
    %118 = vector.broadcast %117 : vector<8x1xf32> to vector<8x8xf32>
    %119 = arith.mulf %114, %118 : vector<8x8xf32>
    %120 = arith.truncf %119 : vector<8x8xf32> to vector<8x8xbf16>
    %121 = vector.extract_strided_slice %80 {offsets = [0, 8], sizes = [8, 8], strides = [1, 1]} : vector<8x32xbf16> to vector<8x8xbf16>
    %cst_55 = arith.constant dense<0.000000e+00> : vector<8x8xf32>
    %122 = tpu.matmul %120, %121, %cst_55 {dimension_numbers = #tpu.dot_dimension_numbers<[1], [0], [0], [1], [0, 0, 1, 1], [], []>} : vector<8x8xbf16>, vector<8x8xbf16>, vector<8x8xf32> -> vector<8x8xf32>
    %123 = arith.truncf %122 : vector<8x8xf32> to vector<8x8xbf16>
    %124 = vector.extract_strided_slice %81 {offsets = [8, 0], sizes = [8, 32], strides = [1, 1]} : vector<32x32xbf16> to vector<8x32xbf16>
    %cst_56 = arith.constant dense<0.000000e+00> : vector<8x32xf32>
    %125 = tpu.matmul %123, %124, %cst_56 {dimension_numbers = #tpu.dot_dimension_numbers<[1], [0], [0], [1], [0, 0, 1, 1], [], []>} : vector<8x8xbf16>, vector<8x32xbf16>, vector<8x32xf32> -> vector<8x32xf32>
    %126 = arith.addf %104, %125 : vector<8x32xf32>
    %127 = vector.extract_strided_slice %78 {offsets = [0, 16], sizes = [8, 8], strides = [1, 1]} : vector<8x32xbf16> to vector<8x8xbf16>
    %128 = vector.extract_strided_slice %79 {offsets = [0, 16], sizes = [8, 8], strides = [1, 1]} : vector<8x32xbf16> to vector<8x8xbf16>
    %cst_57 = arith.constant dense<0.000000e+00> : vector<8x8xf32>
    %129 = tpu.matmul %127, %128, %cst_57 {dimension_numbers = #tpu.dot_dimension_numbers<[1], [1], [0], [0], [0, 0, 1, 0], [], []>} : vector<8x8xbf16>, vector<8x8xbf16>, vector<8x8xf32> -> vector<8x8xf32>
    %130 = vector.broadcast %77 : vector<1x8xf32> to vector<8x8xf32>
    %131 = arith.addf %129, %130 : vector<8x8xf32>
    %cst_58 = arith.constant dense<0xFF800000> : vector<8xf32>
    %132 = vector.multi_reduction <maximumf>, %131, %cst_58 [1] : vector<8x8xf32> to vector<8xf32>
    %133 = vector.shape_cast %132 : vector<8xf32> to vector<8x1xf32>
    %134 = vector.broadcast %133 : vector<8x1xf32> to vector<8x8xf32>
    %135 = arith.subf %131, %134 : vector<8x8xf32>
    %136 = math.exp %135 : vector<8x8xf32>
    %cst_59 = arith.constant dense<0.000000e+00> : vector<8xf32>
    %137 = vector.multi_reduction <add>, %136, %cst_59 [1] : vector<8x8xf32> to vector<8xf32>
    %138 = vector.shape_cast %137 : vector<8xf32> to vector<8x1xf32>
    %139 = tpu.reciprocal %138 {approx = true} : vector<8x1xf32> -> vector<8x1xf32>
    %140 = vector.broadcast %139 : vector<8x1xf32> to vector<8x8xf32>
    %141 = arith.mulf %136, %140 : vector<8x8xf32>
    %142 = arith.truncf %141 : vector<8x8xf32> to vector<8x8xbf16>
    %143 = vector.extract_strided_slice %80 {offsets = [0, 16], sizes = [8, 8], strides = [1, 1]} : vector<8x32xbf16> to vector<8x8xbf16>
    %cst_60 = arith.constant dense<0.000000e+00> : vector<8x8xf32>
    %144 = tpu.matmul %142, %143, %cst_60 {dimension_numbers = #tpu.dot_dimension_numbers<[1], [0], [0], [1], [0, 0, 1, 1], [], []>} : vector<8x8xbf16>, vector<8x8xbf16>, vector<8x8xf32> -> vector<8x8xf32>
    %145 = arith.truncf %144 : vector<8x8xf32> to vector<8x8xbf16>
    %146 = vector.extract_strided_slice %81 {offsets = [16, 0], sizes = [8, 32], strides = [1, 1]} : vector<32x32xbf16> to vector<8x32xbf16>
    %cst_61 = arith.constant dense<0.000000e+00> : vector<8x32xf32>
    %147 = tpu.matmul %145, %146, %cst_61 {dimension_numbers = #tpu.dot_dimension_numbers<[1], [0], [0], [1], [0, 0, 1, 1], [], []>} : vector<8x8xbf16>, vector<8x32xbf16>, vector<8x32xf32> -> vector<8x32xf32>
    %148 = arith.addf %126, %147 : vector<8x32xf32>
    %149 = vector.extract_strided_slice %78 {offsets = [0, 24], sizes = [8, 8], strides = [1, 1]} : vector<8x32xbf16> to vector<8x8xbf16>
    %150 = vector.extract_strided_slice %79 {offsets = [0, 24], sizes = [8, 8], strides = [1, 1]} : vector<8x32xbf16> to vector<8x8xbf16>
    %cst_62 = arith.constant dense<0.000000e+00> : vector<8x8xf32>
    %151 = tpu.matmul %149, %150, %cst_62 {dimension_numbers = #tpu.dot_dimension_numbers<[1], [1], [0], [0], [0, 0, 1, 0], [], []>} : vector<8x8xbf16>, vector<8x8xbf16>, vector<8x8xf32> -> vector<8x8xf32>
    %152 = vector.broadcast %77 : vector<1x8xf32> to vector<8x8xf32>
    %153 = arith.addf %151, %152 : vector<8x8xf32>
    %cst_63 = arith.constant dense<0xFF800000> : vector<8xf32>
    %154 = vector.multi_reduction <maximumf>, %153, %cst_63 [1] : vector<8x8xf32> to vector<8xf32>
    %155 = vector.shape_cast %154 : vector<8xf32> to vector<8x1xf32>
    %156 = vector.broadcast %155 : vector<8x1xf32> to vector<8x8xf32>
    %157 = arith.subf %153, %156 : vector<8x8xf32>
    %158 = math.exp %157 : vector<8x8xf32>
    %cst_64 = arith.constant dense<0.000000e+00> : vector<8xf32>
    %159 = vector.multi_reduction <add>, %158, %cst_64 [1] : vector<8x8xf32> to vector<8xf32>
    %160 = vector.shape_cast %159 : vector<8xf32> to vector<8x1xf32>
    %161 = tpu.reciprocal %160 {approx = true} : vector<8x1xf32> -> vector<8x1xf32>
    %162 = vector.broadcast %161 : vector<8x1xf32> to vector<8x8xf32>
    %163 = arith.mulf %158, %162 : vector<8x8xf32>
    %164 = arith.truncf %163 : vector<8x8xf32> to vector<8x8xbf16>
    %165 = vector.extract_strided_slice %80 {offsets = [0, 24], sizes = [8, 8], strides = [1, 1]} : vector<8x32xbf16> to vector<8x8xbf16>
    %cst_65 = arith.constant dense<0.000000e+00> : vector<8x8xf32>
    %166 = tpu.matmul %164, %165, %cst_65 {dimension_numbers = #tpu.dot_dimension_numbers<[1], [0], [0], [1], [0, 0, 1, 1], [], []>} : vector<8x8xbf16>, vector<8x8xbf16>, vector<8x8xf32> -> vector<8x8xf32>
    %167 = arith.truncf %166 : vector<8x8xf32> to vector<8x8xbf16>
    %168 = vector.extract_strided_slice %81 {offsets = [24, 0], sizes = [8, 32], strides = [1, 1]} : vector<32x32xbf16> to vector<8x32xbf16>
    %cst_66 = arith.constant dense<0.000000e+00> : vector<8x32xf32>
    %169 = tpu.matmul %167, %168, %cst_66 {dimension_numbers = #tpu.dot_dimension_numbers<[1], [0], [0], [1], [0, 0, 1, 1], [], []>} : vector<8x8xbf16>, vector<8x32xbf16>, vector<8x32xf32> -> vector<8x32xf32>
    %170 = arith.addf %148, %169 : vector<8x32xf32>
    %171 = arith.addf %1, %170 : vector<8x32xf32>
    %c0_67 = arith.constant 0 : index
    %c0_68 = arith.constant 0 : index
    %172 = vector.load %arg14[%c0_67, %c0_68] : memref<1x32xf32, #tpu.memory_space<vmem>>, vector<1x32xf32>
    %173 = vector.broadcast %172 : vector<1x32xf32> to vector<8x32xf32>
    %174 = arith.addf %171, %173 : vector<8x32xf32>
    %cst_69 = arith.constant dense<0.000000e+00> : vector<8xf32>
    %175 = vector.multi_reduction <add>, %174, %cst_69 [1] : vector<8x32xf32> to vector<8xf32>
    %176 = vector.shape_cast %175 : vector<8xf32> to vector<8x1xf32>
    %cst_70 = arith.constant 3.200000e+01 : f32
    %177 = vector.broadcast %cst_70 : f32 to vector<8x1xf32>
    %178 = arith.divf %176, %177 : vector<8x1xf32>
    %179 = vector.broadcast %178 : vector<8x1xf32> to vector<8x32xf32>
    %180 = arith.subf %174, %179 : vector<8x32xf32>
    %181 = arith.mulf %180, %180 : vector<8x32xf32>
    %cst_71 = arith.constant dense<0.000000e+00> : vector<8xf32>
    %182 = vector.multi_reduction <add>, %181, %cst_71 [1] : vector<8x32xf32> to vector<8xf32>
    %183 = vector.shape_cast %182 : vector<8xf32> to vector<8x1xf32>
    %cst_72 = arith.constant 0.0322580636 : f32
    %184 = vector.broadcast %cst_72 : f32 to vector<8x1xf32>
    %185 = arith.mulf %183, %184 : vector<8x1xf32>
    %186 = vector.broadcast %178 : vector<8x1xf32> to vector<8x32xf32>
    %187 = arith.subf %174, %186 : vector<8x32xf32>
    %cst_73 = arith.constant 9.99999997E-7 : f32
    %188 = vector.broadcast %cst_73 : f32 to vector<8x1xf32>
    %189 = arith.addf %185, %188 : vector<8x1xf32>
    %190 = math.rsqrt %189 : vector<8x1xf32>
    %191 = vector.broadcast %190 : vector<8x1xf32> to vector<8x32xf32>
    %192 = arith.mulf %187, %191 : vector<8x32xf32>
    %c0_74 = arith.constant 0 : index
    %c0_75 = arith.constant 0 : index
    %193 = vector.load %arg15[%c0_74, %c0_75] : memref<1x32xf32, #tpu.memory_space<vmem>>, vector<1x32xf32>
    %194 = vector.broadcast %193 : vector<1x32xf32> to vector<8x32xf32>
    %195 = arith.mulf %194, %192 : vector<8x32xf32>
    %c0_76 = arith.constant 0 : index
    %c0_77 = arith.constant 0 : index
    %196 = vector.load %arg16[%c0_76, %c0_77] : memref<1x32xf32, #tpu.memory_space<vmem>>, vector<1x32xf32>
    %197 = vector.broadcast %196 : vector<1x32xf32> to vector<8x32xf32>
    %198 = arith.addf %195, %197 : vector<8x32xf32>
    %199 = arith.truncf %198 : vector<8x32xf32> to vector<8x32xbf16>
    %c0_78 = arith.constant 0 : index
    %c0_79 = arith.constant 0 : index
    %200 = vector.load %arg17[%c0_78, %c0_79] : memref<32x64xbf16, #tpu.memory_space<vmem>>, vector<32x64xbf16>
    %cst_80 = arith.constant dense<0.000000e+00> : vector<8x64xf32>
    %201 = tpu.matmul %199, %200, %cst_80 {dimension_numbers = #tpu.dot_dimension_numbers<[1], [0], [0], [1], [0, 0, 1, 1], [], []>} : vector<8x32xbf16>, vector<32x64xbf16>, vector<8x64xf32> -> vector<8x64xf32>
    %c0_81 = arith.constant 0 : index
    %c0_82 = arith.constant 0 : index
    %202 = vector.load %arg18[%c0_81, %c0_82] : memref<1x64xf32, #tpu.memory_space<vmem>>, vector<1x64xf32>
    %203 = vector.broadcast %202 : vector<1x64xf32> to vector<8x64xf32>
    %204 = arith.addf %201, %203 : vector<8x64xf32>
    %cst_83 = arith.constant 0.000000e+00 : f32
    %205 = vector.broadcast %cst_83 : f32 to vector<8x64xf32>
    %206 = arith.maximumf %204, %205 : vector<8x64xf32>
    %207 = arith.truncf %206 : vector<8x64xf32> to vector<8x64xbf16>
    %c0_84 = arith.constant 0 : index
    %c0_85 = arith.constant 0 : index
    %208 = vector.load %arg19[%c0_84, %c0_85] : memref<64x32xbf16, #tpu.memory_space<vmem>>, vector<64x32xbf16>
    %cst_86 = arith.constant dense<0.000000e+00> : vector<8x32xf32>
    %209 = tpu.matmul %207, %208, %cst_86 {dimension_numbers = #tpu.dot_dimension_numbers<[1], [0], [0], [1], [0, 0, 1, 1], [], []>} : vector<8x64xbf16>, vector<64x32xbf16>, vector<8x32xf32> -> vector<8x32xf32>
    %c0_87 = arith.constant 0 : index
    %c0_88 = arith.constant 0 : index
    %210 = vector.load %arg20[%c0_87, %c0_88] : memref<1x32xf32, #tpu.memory_space<vmem>>, vector<1x32xf32>
    %211 = vector.broadcast %210 : vector<1x32xf32> to vector<8x32xf32>
    %212 = arith.addf %209, %211 : vector<8x32xf32>
    %213 = arith.addf %174, %212 : vector<8x32xf32>
    %c0_89 = arith.constant 0 : index
    %c0_90 = arith.constant 0 : index
    %c0_91 = arith.constant 0 : index
    %214 = vector.load %arg21[%c0_89, %c0_90, %c0_91] : memref<1x8x32xf32, #tpu.memory_space<vmem>>, vector<1x8x32xf32>
    %215 = vector.shape_cast %214 : vector<1x8x32xf32> to vector<8x32xf32>
    %216 = vector.shape_cast %213 : vector<8x32xf32> to vector<1x8x32xf32>
    tpu.vector_store %arg21[%c0_89, %c0_90, %c0_91], %216 {strides = array<i32>} : memref<1x8x32xf32, #tpu.memory_space<vmem>>, vector<1x8x32xf32>,
    return
  }
  func.func @transform_0(%arg0: i32, %arg1: i32) -> (i32, i32, i32) {
    %c0_i32 = arith.constant 0 : i32
    %c0_i32_0 = arith.constant 0 : i32
    return %arg0, %arg1, %c0_i32 : i32, i32, i32
  }
  func.func @transform_1(%arg0: i32, %arg1: i32) -> (i32, i32, i32) {
    %c0_i32 = arith.constant 0 : i32
    %c0_i32_0 = arith.constant 0 : i32
    %c0_i32_1 = arith.constant 0 : i32
    return %arg0, %c0_i32, %c0_i32_0 : i32, i32, i32
  }
  func.func @transform_2(%arg0: i32, %arg1: i32) -> (i32, i32, i32) {
    %c0_i32 = arith.constant 0 : i32
    %c0_i32_0 = arith.constant 0 : i32
    %c0_i32_1 = arith.constant 0 : i32
    return %arg0, %c0_i32, %c0_i32_0 : i32, i32, i32
  }
  func.func @transform_3(%arg0: i32, %arg1: i32) -> (i32, i32) {
    %c0_i32 = arith.constant 0 : i32
    %c0_i32_0 = arith.constant 0 : i32
    %c0_i32_1 = arith.constant 0 : i32
    return %c0_i32, %c0_i32_0 : i32, i32
  }
  func.func @transform_4(%arg0: i32, %arg1: i32) -> (i32, i32) {
    %c0_i32 = arith.constant 0 : i32
    %c0_i32_0 = arith.constant 0 : i32
    %c0_i32_1 = arith.constant 0 : i32
    return %c0_i32, %c0_i32_0 : i32, i32
  }
  func.func @transform_5(%arg0: i32, %arg1: i32) -> (i32, i32) {
    %c0_i32 = arith.constant 0 : i32
    %c0_i32_0 = arith.constant 0 : i32
    %c0_i32_1 = arith.constant 0 : i32
    return %c0_i32, %c0_i32_0 : i32, i32
  }
  func.func @transform_6(%arg0: i32, %arg1: i32) -> (i32, i32) {
    %c0_i32 = arith.constant 0 : i32
    %c0_i32_0 = arith.constant 0 : i32
    %c0_i32_1 = arith.constant 0 : i32
    return %c0_i32, %c0_i32_0 : i32, i32
  }
  func.func @transform_7(%arg0: i32, %arg1: i32) -> (i32, i32) {
    %c0_i32 = arith.constant 0 : i32
    %c0_i32_0 = arith.constant 0 : i32
    %c0_i32_1 = arith.constant 0 : i32
    return %c0_i32, %c0_i32_0 : i32, i32
  }
  func.func @transform_8(%arg0: i32, %arg1: i32) -> (i32, i32) {
    %c0_i32 = arith.constant 0 : i32
    %c0_i32_0 = arith.constant 0 : i32
    %c0_i32_1 = arith.constant 0 : i32
    return %c0_i32, %c0_i32_0 : i32, i32
  }
  func.func @transform_9(%arg0: i32, %arg1: i32) -> (i32, i32) {
    %c0_i32 = arith.constant 0 : i32
    %c0_i32_0 = arith.constant 0 : i32
    %c0_i32_1 = arith.constant 0 : i32
    return %c0_i32, %c0_i32_0 : i32, i32
  }
  func.func @transform_10(%arg0: i32, %arg1: i32) -> (i32, i32) {
    %c0_i32 = arith.constant 0 : i32
    %c0_i32_0 = arith.constant 0 : i32
    %c0_i32_1 = arith.constant 0 : i32
    return %c0_i32, %c0_i32_0 : i32, i32
  }
  func.func @transform_11(%arg0: i32, %arg1: i32) -> (i32, i32) {
    %c0_i32 = arith.constant 0 : i32
    %c0_i32_0 = arith.constant 0 : i32
    %c0_i32_1 = arith.constant 0 : i32
    return %c0_i32, %c0_i32_0 : i32, i32
  }
  func.func @transform_12(%arg0: i32, %arg1: i32) -> (i32, i32) {
    %c0_i32 = arith.constant 0 : i32
    %c0_i32_0 = arith.constant 0 : i32
    %c0_i32_1 = arith.constant 0 : i32
    return %c0_i32, %c0_i32_0 : i32, i32
  }
  func.func @transform_13(%arg0: i32, %arg1: i32) -> (i32, i32) {
    %c0_i32 = arith.constant 0 : i32
    %c0_i32_0 = arith.constant 0 : i32
    %c0_i32_1 = arith.constant 0 : i32
    return %c0_i32, %c0_i32_0 : i32, i32
  }
  func.func @transform_14(%arg0: i32, %arg1: i32) -> (i32, i32) {
    %c0_i32 = arith.constant 0 : i32
    %c0_i32_0 = arith.constant 0 : i32
    %c0_i32_1 = arith.constant 0 : i32
    return %c0_i32, %c0_i32_0 : i32, i32
  }
  func.func @transform_15(%arg0: i32, %arg1: i32) -> (i32, i32) {
    %c0_i32 = arith.constant 0 : i32
    %c0_i32_0 = arith.constant 0 : i32
    %c0_i32_1 = arith.constant 0 : i32
    return %c0_i32, %c0_i32_0 : i32, i32
  }
  func.func @transform_16(%arg0: i32, %arg1: i32) -> (i32, i32) {
    %c0_i32 = arith.constant 0 : i32
    %c0_i32_0 = arith.constant 0 : i32
    %c0_i32_1 = arith.constant 0 : i32
    return %c0_i32, %c0_i32_0 : i32, i32
  }
  func.func @transform_17(%arg0: i32, %arg1: i32) -> (i32, i32) {
    %c0_i32 = arith.constant 0 : i32
    %c0_i32_0 = arith.constant 0 : i32
    %c0_i32_1 = arith.constant 0 : i32
    return %c0_i32, %c0_i32_0 : i32, i32
  }
  func.func @transform_18(%arg0: i32, %arg1: i32) -> (i32, i32) {
    %c0_i32 = arith.constant 0 : i32
    %c0_i32_0 = arith.constant 0 : i32
    %c0_i32_1 = arith.constant 0 : i32
    return %c0_i32, %c0_i32_0 : i32, i32
  }
  func.func @transform_19(%arg0: i32, %arg1: i32) -> (i32, i32, i32) {
    %c0_i32 = arith.constant 0 : i32
    %c0_i32_0 = arith.constant 0 : i32
    return %arg0, %arg1, %c0_i32 : i32, i32, i32
  }
}

</mosaic_0001>

<llo_original>
// kernel: tpu_custom_call.1
$region0: #{tpu_custom_call.1}
  #allocation0 [shape = 'u32[]', space=smem, size = 0x4, offset = 0x4, fixed_abs, tag = 'smem constant byte address 0x4 - core index']
  #allocation1 [shape = 'u32[144,128]{1,0:T(1,128)}', space=vmem, size = 0x12000, scoped, tag = 'internal scratch']
  %s0 = inlined_call_operand.hbm [shape: f32[2,8,32], index: 0, kind: input, shape index: {}]
  %s1 = inlined_call_operand.hbm [shape: f32[2,8,32], index: 1, kind: input, shape index: {}]
  %s2 = inlined_call_operand.hbm [shape: f32[2,1,8], index: 2, kind: input, shape index: {}]
  %s3 = inlined_call_operand.hbm [shape: f32[1,32], index: 3, kind: input, shape index: {}]
  %s4 = inlined_call_operand.hbm [shape: f32[1,32], index: 4, kind: input, shape index: {}]
  %s5 = inlined_call_operand.hbm [shape: bf16[32,32], index: 5, kind: input, shape index: {}]
  %s6 = inlined_call_operand.hbm [shape: f32[1,32], index: 6, kind: input, shape index: {}]
  %s7 = inlined_call_operand.hbm [shape: bf16[32,32], index: 7, kind: input, shape index: {}]
  %s8 = inlined_call_operand.hbm [shape: f32[1,32], index: 8, kind: input, shape index: {}]
  %s9 = inlined_call_operand.hbm [shape: bf16[32,32], index: 9, kind: input, shape index: {}]
  %s10 = inlined_call_operand.hbm [shape: f32[1,32], index: 10, kind: input, shape index: {}]
  %s11 = inlined_call_operand.hbm [shape: bf16[32,32], index: 11, kind: input, shape index: {}]
  %s12 = inlined_call_operand.hbm [shape: f32[1,32], index: 12, kind: input, shape index: {}]
  %s13 = inlined_call_operand.hbm [shape: f32[1,32], index: 13, kind: input, shape index: {}]
  %s14 = inlined_call_operand.hbm [shape: f32[1,32], index: 14, kind: input, shape index: {}]
  %s15 = inlined_call_operand.hbm [shape: bf16[32,64], index: 15, kind: input, shape index: {}]
  %s16 = inlined_call_operand.hbm [shape: f32[1,64], index: 16, kind: input, shape index: {}]
  %s17 = inlined_call_operand.hbm [shape: bf16[64,32], index: 17, kind: input, shape index: {}]
  %s18 = inlined_call_operand.hbm [shape: f32[1,32], index: 18, kind: input, shape index: {}]
  %s19 = inlined_call_operand.hbm [shape: f32[2,8,32], index: 19, kind: output, shape index: {}]
  %s20 = sld [smem:[#allocation0]]
  $region185: #{tpu_custom_call.1} parent=0
    _
  %s22 = ssub.s32 1, %s20
  %s23 = scalar_select 0, %s22, %s20
  $region1: #{tpu_custom_call.1} parent=0
    #allocation2 [shape = 'u8[8192]{0}', space=vmem, size = 0x2000, scoped, tag = 'input window, operand 0']
    #allocation3 [shape = 's32[2]{0}', space=sflag, size = 0x8, scoped, tag = 'scoped memory for tpu_custom_call.1']
    #allocation4 [shape = 's32[2]{0}', space=sflag, size = 0x8, scoped, tag = 'scoped memory for tpu_custom_call.1']
    #allocation5 [shape = 'u8[8192]{0}', space=vmem, size = 0x2000, scoped, tag = 'input window, operand 1']
    #allocation6 [shape = 's32[2]{0}', space=sflag, size = 0x8, scoped, tag = 'scoped memory for tpu_custom_call.1']
    #allocation7 [shape = 'u8[1024]{0}', space=vmem, size = 0x400, scoped, tag = 'input window, operand 2']
    #allocation8 [shape = 'u8[512]{0}', space=vmem, size = 0x400, scoped, tag = 'input window, operand 3, single buffered']
    #allocation9 [shape = 's32[1]{0}', space=sflag, size = 0x4, scoped, tag = 'scoped memory for tpu_custom_call.1']
    #allocation10 [shape = 'u8[512]{0}', space=vmem, size = 0x400, scoped, tag = 'input window, operand 4, single buffered']
    #allocation11 [shape = 'u8[8192]{0}', space=vmem, size = 0x2000, scoped, tag = 'input window, operand 5, single buffered']
    #allocation12 [shape = 's32[1]{0}', space=sflag, size = 0x4, scoped, tag = 'scoped memory for tpu_custom_call.1']
    #allocation13 [shape = 'u8[512]{0}', space=vmem, size = 0x400, scoped, tag = 'input window, operand 6, single buffered']
    #allocation14 [shape = 'u8[8192]{0}', space=vmem, size = 0x2000, scoped, tag = 'input window, operand 7, single buffered']
    #allocation15 [shape = 's32[1]{0}', space=sflag, size = 0x4, scoped, tag = 'scoped memory for tpu_custom_call.1']
    #allocation16 [shape = 'u8[512]{0}', space=vmem, size = 0x400, scoped, tag = 'input window, operand 8, single buffered']
    #allocation17 [shape = 'u8[8192]{0}', space=vmem, size = 0x2000, scoped, tag = 'input window, operand 9, single buffered']
    #allocation18 [shape = 's32[1]{0}', space=sflag, size = 0x4, scoped, tag = 'scoped memory for tpu_custom_call.1']
    #allocation19 [shape = 'u8[512]{0}', space=vmem, size = 0x400, scoped, tag = 'input window, operand 10, single buffered']
    #allocation20 [shape = 'u8[8192]{0}', space=vmem, size = 0x2000, scoped, tag = 'input window, operand 11, single buffered']
    #allocation21 [shape = 's32[1]{0}', space=sflag, size = 0x4, scoped, tag = 'scoped memory for tpu_custom_call.1']
    #allocation22 [shape = 'u8[512]{0}', space=vmem, size = 0x400, scoped, tag = 'input window, operand 12, single buffered']
    #allocation23 [shape = 'u8[512]{0}', space=vmem, size = 0x400, scoped, tag = 'input window, operand 13, single buffered']
    #allocation24 [shape = 's32[1]{0}', space=sflag, size = 0x4, scoped, tag = 'scoped memory for tpu_custom_call.1']
    #allocation25 [shape = 'u8[512]{0}', space=vmem, size = 0x400, scoped, tag = 'input window, operand 14, single buffered']
    #allocation26 [shape = 'u8[8192]{0}', space=vmem, size = 0x2000, scoped, tag = 'input window, operand 15, single buffered']
    #allocation27 [shape = 's32[1]{0}', space=sflag, size = 0x4, scoped, tag = 'scoped memory for tpu_custom_call.1']
    #allocation28 [shape = 'u8[512]{0}', space=vmem, size = 0x400, scoped, tag = 'input window, operand 16, single buffered']
    #allocation29 [shape = 'u8[16384]{0}', space=vmem, size = 0x4000, scoped, tag = 'input window, operand 17, single buffered']
    #allocation30 [shape = 's32[1]{0}', space=sflag, size = 0x4, scoped, tag = 'scoped memory for tpu_custom_call.1']
    #allocation31 [shape = 'u8[512]{0}', space=vmem, size = 0x400, scoped, tag = 'input window, operand 18, single buffered']
    #allocation32 [shape = 'u8[8192]{0}', space=vmem, size = 0x2000, scoped, tag = 'output window, operand 0']
    %24 = vsyncpa [#allocation3], 0
    %s25 = scalar_lea.sflag [#allocation3], 1
    %26 = vsyncpa %s25, 0
    %27 = vsyncpa [#allocation6], 0
    %s28 = scalar_lea.sflag [#allocation6], 1
    %29 = vsyncpa %s28, 0
    %30 = vsyncpa [#allocation9], 0
    %31 = vsyncpa [#allocation12], 0
    %32 = vsyncpa [#allocation15], 0
    %33 = vsyncpa [#allocation18], 0
    %34 = vsyncpa [#allocation21], 0
    %35 = vsyncpa [#allocation24], 0
    %36 = vsyncpa [#allocation27], 0
    %37 = vsyncpa [#allocation30], 0
    %38 = vsyncpa [#allocation4], 0
    %s39 = scalar_lea.sflag [#allocation4], 1
    %40 = vsyncpa %s39, 0
    loop: start=0, step=1, limit=4
    $region2: #{tpu_custom_call.1} parent=1 // loop_pre_header
      _
    $region3: #{tpu_custom_call.1} parent=1 // loop_header
      %s42 = sphi 0, %s46
      %p43 = scmp.ge.s32.totalorder %s42, 4
      %s49 = sphi 0, %s61
      %s50 = sphi 0, %s57
      %s51 = sphi 0, %s49
      %s52 = sphi 0, %s50
      %s53 = sphi 0, %s51
      %s54 = sphi 0, %s52
      %s66 = sphi 0, %s68
      %s69 = sphi 0, %s66
      %s70 = sphi 0, %s69
      %s86 = sphi 0, %s70
      %s92 = sphi 0, %s94
      %s95 = sphi 0, %s92
      %s96 = sphi 0, %s95
      %s112 = sphi 0, %s96
      %s118 = sphi 0, %s120
      %s121 = sphi 0, %s118
      %s122 = sphi 0, %s121
      %s138 = sphi 0, %s122
      %s142 = sphi 0, %s142
      %s144 = sphi 0, %s142
      %s145 = sphi 0, %s144
      %s159 = sphi 0, %s145
      %s163 = sphi 0, %s163
      %s165 = sphi 0, %s163
      %s166 = sphi 0, %s165
      %s180 = sphi 0, %s166
      %s184 = sphi 0, %s184
      %s186 = sphi 0, %s184
      %s187 = sphi 0, %s186
      %s201 = sphi 0, %s187
      %s205 = sphi 0, %s205
      %s207 = sphi 0, %s205
      %s208 = sphi 0, %s207
      %s222 = sphi 0, %s208
      %s226 = sphi 0, %s226
      %s228 = sphi 0, %s226
      %s229 = sphi 0, %s228
      %s243 = sphi 0, %s229
      %s247 = sphi 0, %s247
      %s249 = sphi 0, %s247
      %s250 = sphi 0, %s249
      %s264 = sphi 0, %s250
      %s268 = sphi 0, %s268
      %s270 = sphi 0, %s268
      %s271 = sphi 0, %s270
      %s285 = sphi 0, %s271
      %s289 = sphi 0, %s289
      %s291 = sphi 0, %s289
      %s292 = sphi 0, %s291
      %s306 = sphi 0, %s292
      %s310 = sphi 0, %s310
      %s312 = sphi 0, %s310
      %s313 = sphi 0, %s312
      %s327 = sphi 0, %s313
      %s331 = sphi 0, %s331
      %s333 = sphi 0, %s331
      %s334 = sphi 0, %s333
      %s348 = sphi 0, %s334
      %s352 = sphi 0, %s352
      %s354 = sphi 0, %s352
      %s355 = sphi 0, %s354
      %s369 = sphi 0, %s355
      %s373 = sphi 0, %s373
      %s375 = sphi 0, %s373
      %s376 = sphi 0, %s375
      %s390 = sphi 0, %s376
      %s394 = sphi 0, %s394
      %s396 = sphi 0, %s394
      %s397 = sphi 0, %s396
      %s411 = sphi 0, %s397
      %s415 = sphi 0, %s415
      %s417 = sphi 0, %s415
      %s418 = sphi 0, %s417
      %s432 = sphi 0, %s418
      %s436 = sphi 0, %s436
      %s438 = sphi 0, %s436
      %s439 = sphi 0, %s438
      %s453 = sphi 0, %s439
      %s457 = sphi 0, %s457
      %s459 = sphi 0, %s457
      %s460 = sphi 0, %s459
      %s474 = sphi 0, %s460
      %s482 = sphi 0, %s484
      %s485 = sphi 0, %s482
      %s486 = sphi 0, %s485
      %s502 = sphi 0, %s486
    $region4: #{tpu_custom_call.1} parent=1 // loop_header_branch
      %45 = sbr.rel (%p43) target = $region8
    $region5: #{tpu_custom_call.1} parent=1 // loop_body
      %s47 = ssub.s32 %s42, 1
      %s48 = ssub.s32 %s42, 2
      %s55 = sadd.s32 1, %s50
      %p56 = scmp.ge.s32.totalorder %s55, 1
      %s57 = scalar_select %p56, 0, %s55
      %s58 = sadd.s32 1, %s49
      %s59 = scalar_select %p56, %s58, %s49
      %p60 = scmp.ge.s32.totalorder %s59, 2
      %s61 = scalar_select %p60, 0, %s59
      %s62 = ssub.s32 %s49, %s61
      %s63 = ssub.s32 %s50, %s57
      %s64 = sor.u32 %s62, %s63
      %p65 = scmp.eq.s32.totalorder %s64, 0
      %s67 = sadd.s32 %s66, 1
      %s68 = scalar_select %p65, %s66, %s67
      %p71 = pneg %p65
      %p72 = scmp.eq.s32.totalorder %s42, 1
      %p73 = por %p71, %p72
      %p74 = scmp.ne.s32.totalorder %s66, %s69
      %p75 = scmp.eq.s32.totalorder %s42, 0
      %p76 = por %p74, %p75
      %p77 = scmp.ne.s32.totalorder %s66, %s69
      %p78 = scmp.eq.s32.totalorder %s47, 1
      %p79 = por %p77, %p78
      %p80 = scmp.ne.s32.totalorder %s69, %s70
      %p81 = scmp.eq.s32.totalorder %s47, 0
      %p82 = por %p80, %p81
      %p83 = scmp.ne.s32.totalorder %s69, %s70
      %p84 = scmp.eq.s32.totalorder %s48, 1
      %p85 = por %p83, %p84
      %p87 = scmp.ne.s32.totalorder %s70, %s86
      %p88 = scmp.eq.s32.totalorder %s48, 0
      %p89 = por %p87, %p88
      %s90 = ssub.s32 %s49, %s61
      %p91 = scmp.eq.s32.totalorder %s90, 0
      %s93 = sadd.s32 %s92, 1
      %s94 = scalar_select %p91, %s92, %s93
      %p97 = pneg %p91
      %p98 = scmp.eq.s32.totalorder %s42, 1
      %p99 = por %p97, %p98
      %p100 = scmp.ne.s32.totalorder %s92, %s95
      %p101 = scmp.eq.s32.totalorder %s42, 0
      %p102 = por %p100, %p101
      %p103 = scmp.ne.s32.totalorder %s92, %s95
      %p104 = scmp.eq.s32.totalorder %s47, 1
      %p105 = por %p103, %p104
      %p106 = scmp.ne.s32.totalorder %s95, %s96
      %p107 = scmp.eq.s32.totalorder %s47, 0
      %p108 = por %p106, %p107
      %p109 = scmp.ne.s32.totalorder %s95, %s96
      %p110 = scmp.eq.s32.totalorder %s48, 1
      %p111 = por %p109, %p110
      %p113 = scmp.ne.s32.totalorder %s96, %s112
      %p114 = scmp.eq.s32.totalorder %s48, 0
      %p115 = por %p113, %p114
      %s116 = ssub.s32 %s49, %s61
      %p117 = scmp.eq.s32.totalorder %s116, 0
      %s119 = sadd.s32 %s118, 1
      %s120 = scalar_select %p117, %s118, %s119
      %p123 = pneg %p117
      %p124 = scmp.eq.s32.totalorder %s42, 1
      %p125 = por %p123, %p124
      %p126 = scmp.ne.s32.totalorder %s118, %s121
      %p127 = scmp.eq.s32.totalorder %s42, 0
      %p128 = por %p126, %p127
      %p129 = scmp.ne.s32.totalorder %s118, %s121
      %p130 = scmp.eq.s32.totalorder %s47, 1
      %p131 = por %p129, %p130
      %p132 = scmp.ne.s32.totalorder %s121, %s122
      %p133 = scmp.eq.s32.totalorder %s47, 0
      %p134 = por %p132, %p133
      %p135 = scmp.ne.s32.totalorder %s121, %s122
      %p136 = scmp.eq.s32.totalorder %s48, 1
      %p137 = por %p135, %p136
      %p139 = scmp.ne.s32.totalorder %s122, %s138
      %p140 = scmp.eq.s32.totalorder %s48, 0
      %p141 = por %p139, %p140
      %s143 = sadd.s32 %s142, 1
      %p146 = scmp.eq.s32.totalorder %s42, 1
      %p147 = scmp.ne.s32.totalorder %s142, %s144
      %p148 = scmp.eq.s32.totalorder %s42, 0
      %p149 = por %p147, %p148
      %p150 = scmp.ne.s32.totalorder %s142, %s144
      %p151 = scmp.eq.s32.totalorder %s47, 1
      %p152 = por %p150, %p151
      %p153 = scmp.ne.s32.totalorder %s144, %s145
      %p154 = scmp.eq.s32.totalorder %s47, 0
      %p155 = por %p153, %p154
      %p156 = scmp.ne.s32.totalorder %s144, %s145
      %p157 = scmp.eq.s32.totalorder %s48, 1
      %p158 = por %p156, %p157
      %p160 = scmp.ne.s32.totalorder %s145, %s159
      %p161 = scmp.eq.s32.totalorder %s48, 0
      %p162 = por %p160, %p161
      %s164 = sadd.s32 %s163, 1
      %p167 = scmp.eq.s32.totalorder %s42, 1
      %p168 = scmp.ne.s32.totalorder %s163, %s165
      %p169 = scmp.eq.s32.totalorder %s42, 0
      %p170 = por %p168, %p169
      %p171 = scmp.ne.s32.totalorder %s163, %s165
      %p172 = scmp.eq.s32.totalorder %s47, 1
      %p173 = por %p171, %p172
      %p174 = scmp.ne.s32.totalorder %s165, %s166
      %p175 = scmp.eq.s32.totalorder %s47, 0
      %p176 = por %p174, %p175
      %p177 = scmp.ne.s32.totalorder %s165, %s166
      %p178 = scmp.eq.s32.totalorder %s48, 1
      %p179 = por %p177, %p178
      %p181 = scmp.ne.s32.totalorder %s166, %s180
      %p182 = scmp.eq.s32.totalorder %s48, 0
      %p183 = por %p181, %p182
      %s185 = sadd.s32 %s184, 1
      %p188 = scmp.eq.s32.totalorder %s42, 1
      %p189 = scmp.ne.s32.totalorder %s184, %s186
      %p190 = scmp.eq.s32.totalorder %s42, 0
      %p191 = por %p189, %p190
      %p192 = scmp.ne.s32.totalorder %s184, %s186
      %p193 = scmp.eq.s32.totalorder %s47, 1
      %p194 = por %p192, %p193
      %p195 = scmp.ne.s32.totalorder %s186, %s187
      %p196 = scmp.eq.s32.totalorder %s47, 0
      %p197 = por %p195, %p196
      %p198 = scmp.ne.s32.totalorder %s186, %s187
      %p199 = scmp.eq.s32.totalorder %s48, 1
      %p200 = por %p198, %p199
      %p202 = scmp.ne.s32.totalorder %s187, %s201
      %p203 = scmp.eq.s32.totalorder %s48, 0
      %p204 = por %p202, %p203
      %s206 = sadd.s32 %s205, 1
      %p209 = scmp.eq.s32.totalorder %s42, 1
      %p210 = scmp.ne.s32.totalorder %s205, %s207
      %p211 = scmp.eq.s32.totalorder %s42, 0
      %p212 = por %p210, %p211
      %p213 = scmp.ne.s32.totalorder %s205, %s207
      %p214 = scmp.eq.s32.totalorder %s47, 1
      %p215 = por %p213, %p214
      %p216 = scmp.ne.s32.totalorder %s207, %s208
      %p217 = scmp.eq.s32.totalorder %s47, 0
      %p218 = por %p216, %p217
      %p219 = scmp.ne.s32.totalorder %s207, %s208
      %p220 = scmp.eq.s32.totalorder %s48, 1
      %p221 = por %p219, %p220
      %p223 = scmp.ne.s32.totalorder %s208, %s222
      %p224 = scmp.eq.s32.totalorder %s48, 0
      %p225 = por %p223, %p224
      %s227 = sadd.s32 %s226, 1
      %p230 = scmp.eq.s32.totalorder %s42, 1
      %p231 = scmp.ne.s32.totalorder %s226, %s228
      %p232 = scmp.eq.s32.totalorder %s42, 0
      %p233 = por %p231, %p232
      %p234 = scmp.ne.s32.totalorder %s226, %s228
      %p235 = scmp.eq.s32.totalorder %s47, 1
      %p236 = por %p234, %p235
      %p237 = scmp.ne.s32.totalorder %s228, %s229
      %p238 = scmp.eq.s32.totalorder %s47, 0
      %p239 = por %p237, %p238
      %p240 = scmp.ne.s32.totalorder %s228, %s229
      %p241 = scmp.eq.s32.totalorder %s48, 1
      %p242 = por %p240, %p241
      %p244 = scmp.ne.s32.totalorder %s229, %s243
      %p245 = scmp.eq.s32.totalorder %s48, 0
      %p246 = por %p244, %p245
      %s248 = sadd.s32 %s247, 1
      %p251 = scmp.eq.s32.totalorder %s42, 1
      %p252 = scmp.ne.s32.totalorder %s247, %s249
      %p253 = scmp.eq.s32.totalorder %s42, 0
      %p254 = por %p252, %p253
      %p255 = scmp.ne.s32.totalorder %s247, %s249
      %p256 = scmp.eq.s32.totalorder %s47, 1
      %p257 = por %p255, %p256
      %p258 = scmp.ne.s32.totalorder %s249, %s250
      %p259 = scmp.eq.s32.totalorder %s47, 0
      %p260 = por %p258, %p259
      %p261 = scmp.ne.s32.totalorder %s249, %s250
      %p262 = scmp.eq.s32.totalorder %s48, 1
      %p263 = por %p261, %p262
      %p265 = scmp.ne.s32.totalorder %s250, %s264
      %p266 = scmp.eq.s32.totalorder %s48, 0
      %p267 = por %p265, %p266
      %s269 = sadd.s32 %s268, 1
      %p272 = scmp.eq.s32.totalorder %s42, 1
      %p273 = scmp.ne.s32.totalorder %s268, %s270
      %p274 = scmp.eq.s32.totalorder %s42, 0
      %p275 = por %p273, %p274
      %p276 = scmp.ne.s32.totalorder %s268, %s270
      %p277 = scmp.eq.s32.totalorder %s47, 1
      %p278 = por %p276, %p277
      %p279 = scmp.ne.s32.totalorder %s270, %s271
      %p280 = scmp.eq.s32.totalorder %s47, 0
      %p281 = por %p279, %p280
      %p282 = scmp.ne.s32.totalorder %s270, %s271
      %p283 = scmp.eq.s32.totalorder %s48, 1
      %p284 = por %p282, %p283
      %p286 = scmp.ne.s32.totalorder %s271, %s285
      %p287 = scmp.eq.s32.totalorder %s48, 0
      %p288 = por %p286, %p287
      %s290 = sadd.s32 %s289, 1
      %p293 = scmp.eq.s32.totalorder %s42, 1
      %p294 = scmp.ne.s32.totalorder %s289, %s291
      %p295 = scmp.eq.s32.totalorder %s42, 0
      %p296 = por %p294, %p295
      %p297 = scmp.ne.s32.totalorder %s289, %s291
      %p298 = scmp.eq.s32.totalorder %s47, 1
      %p299 = por %p297, %p298
      %p300 = scmp.ne.s32.totalorder %s291, %s292
      %p301 = scmp.eq.s32.totalorder %s47, 0
      %p302 = por %p300, %p301
      %p303 = scmp.ne.s32.totalorder %s291, %s292
      %p304 = scmp.eq.s32.totalorder %s48, 1
      %p305 = por %p303, %p304
      %p307 = scmp.ne.s32.totalorder %s292, %s306
      %p308 = scmp.eq.s32.totalorder %s48, 0
      %p309 = por %p307, %p308
      %s311 = sadd.s32 %s310, 1
      %p314 = scmp.eq.s32.totalorder %s42, 1
      %p315 = scmp.ne.s32.totalorder %s310, %s312
      %p316 = scmp.eq.s32.totalorder %s42, 0
      %p317 = por %p315, %p316
      %p318 = scmp.ne.s32.totalorder %s310, %s312
      %p319 = scmp.eq.s32.totalorder %s47, 1
      %p320 = por %p318, %p319
      %p321 = scmp.ne.s32.totalorder %s312, %s313
      %p322 = scmp.eq.s32.totalorder %s47, 0
      %p323 = por %p321, %p322
      %p324 = scmp.ne.s32.totalorder %s312, %s313
      %p325 = scmp.eq.s32.totalorder %s48, 1
      %p326 = por %p324, %p325
      %p328 = scmp.ne.s32.totalorder %s313, %s327
      %p329 = scmp.eq.s32.totalorder %s48, 0
      %p330 = por %p328, %p329
      %s332 = sadd.s32 %s331, 1
      %p335 = scmp.eq.s32.totalorder %s42, 1
      %p336 = scmp.ne.s32.totalorder %s331, %s333
      %p337 = scmp.eq.s32.totalorder %s42, 0
      %p338 = por %p336, %p337
      %p339 = scmp.ne.s32.totalorder %s331, %s333
      %p340 = scmp.eq.s32.totalorder %s47, 1
      %p341 = por %p339, %p340
      %p342 = scmp.ne.s32.totalorder %s333, %s334
      %p343 = scmp.eq.s32.totalorder %s47, 0
      %p344 = por %p342, %p343
      %p345 = scmp.ne.s32.totalorder %s333, %s334
      %p346 = scmp.eq.s32.totalorder %s48, 1
      %p347 = por %p345, %p346
      %p349 = scmp.ne.s32.totalorder %s334, %s348
      %p350 = scmp.eq.s32.totalorder %s48, 0
      %p351 = por %p349, %p350
      %s353 = sadd.s32 %s352, 1
      %p356 = scmp.eq.s32.totalorder %s42, 1
      %p357 = scmp.ne.s32.totalorder %s352, %s354
      %p358 = scmp.eq.s32.totalorder %s42, 0
      %p359 = por %p357, %p358
      %p360 = scmp.ne.s32.totalorder %s352, %s354
      %p361 = scmp.eq.s32.totalorder %s47, 1
      %p362 = por %p360, %p361
      %p363 = scmp.ne.s32.totalorder %s354, %s355
      %p364 = scmp.eq.s32.totalorder %s47, 0
      %p365 = por %p363, %p364
      %p366 = scmp.ne.s32.totalorder %s354, %s355
      %p367 = scmp.eq.s32.totalorder %s48, 1
      %p368 = por %p366, %p367
      %p370 = scmp.ne.s32.totalorder %s355, %s369
      %p371 = scmp.eq.s32.totalorder %s48, 0
      %p372 = por %p370, %p371
      %s374 = sadd.s32 %s373, 1
      %p377 = scmp.eq.s32.totalorder %s42, 1
      %p378 = scmp.ne.s32.totalorder %s373, %s375
      %p379 = scmp.eq.s32.totalorder %s42, 0
      %p380 = por %p378, %p379
      %p381 = scmp.ne.s32.totalorder %s373, %s375
      %p382 = scmp.eq.s32.totalorder %s47, 1
      %p383 = por %p381, %p382
      %p384 = scmp.ne.s32.totalorder %s375, %s376
      %p385 = scmp.eq.s32.totalorder %s47, 0
      %p386 = por %p384, %p385
      %p387 = scmp.ne.s32.totalorder %s375, %s376
      %p388 = scmp.eq.s32.totalorder %s48, 1
      %p389 = por %p387, %p388
      %p391 = scmp.ne.s32.totalorder %s376, %s390
      %p392 = scmp.eq.s32.totalorder %s48, 0
      %p393 = por %p391, %p392
      %s395 = sadd.s32 %s394, 1
      %p398 = scmp.eq.s32.totalorder %s42, 1
      %p399 = scmp.ne.s32.totalorder %s394, %s396
      %p400 = scmp.eq.s32.totalorder %s42, 0
      %p401 = por %p399, %p400
      %p402 = scmp.ne.s32.totalorder %s394, %s396
      %p403 = scmp.eq.s32.totalorder %s47, 1
      %p404 = por %p402, %p403
      %p405 = scmp.ne.s32.totalorder %s396, %s397
      %p406 = scmp.eq.s32.totalorder %s47, 0
      %p407 = por %p405, %p406
      %p408 = scmp.ne.s32.totalorder %s396, %s397
      %p409 = scmp.eq.s32.totalorder %s48, 1
      %p410 = por %p408, %p409
      %p412 = scmp.ne.s32.totalorder %s397, %s411
      %p413 = scmp.eq.s32.totalorder %s48, 0
      %p414 = por %p412, %p413
      %s416 = sadd.s32 %s415, 1
      %p419 = scmp.eq.s32.totalorder %s42, 1
      %p420 = scmp.ne.s32.totalorder %s415, %s417
      %p421 = scmp.eq.s32.totalorder %s42, 0
      %p422 = por %p420, %p421
      %p423 = scmp.ne.s32.totalorder %s415, %s417
      %p424 = scmp.eq.s32.totalorder %s47, 1
      %p425 = por %p423, %p424
      %p426 = scmp.ne.s32.totalorder %s417, %s418
      %p427 = scmp.eq.s32.totalorder %s47, 0
      %p428 = por %p426, %p427
      %p429 = scmp.ne.s32.totalorder %s417, %s418
      %p430 = scmp.eq.s32.totalorder %s48, 1
      %p431 = por %p429, %p430
      %p433 = scmp.ne.s32.totalorder %s418, %s432
      %p434 = scmp.eq.s32.totalorder %s48, 0
      %p435 = por %p433, %p434
      %s437 = sadd.s32 %s436, 1
      %p440 = scmp.eq.s32.totalorder %s42, 1
      %p441 = scmp.ne.s32.totalorder %s436, %s438
      %p442 = scmp.eq.s32.totalorder %s42, 0
      %p443 = por %p441, %p442
      %p444 = scmp.ne.s32.totalorder %s436, %s438
      %p445 = scmp.eq.s32.totalorder %s47, 1
      %p446 = por %p444, %p445
      %p447 = scmp.ne.s32.totalorder %s438, %s439
      %p448 = scmp.eq.s32.totalorder %s47, 0
      %p449 = por %p447, %p448
      %p450 = scmp.ne.s32.totalorder %s438, %s439
      %p451 = scmp.eq.s32.totalorder %s48, 1
      %p452 = por %p450, %p451
      %p454 = scmp.ne.s32.totalorder %s439, %s453
      %p455 = scmp.eq.s32.totalorder %s48, 0
      %p456 = por %p454, %p455
      %s458 = sadd.s32 %s457, 1
      %p461 = scmp.eq.s32.totalorder %s42, 1
      %p462 = scmp.ne.s32.totalorder %s457, %s459
      %p463 = scmp.eq.s32.totalorder %s42, 0
      %p464 = por %p462, %p463
      %p465 = scmp.ne.s32.totalorder %s457, %s459
      %p466 = scmp.eq.s32.totalorder %s47, 1
      %p467 = por %p465, %p466
      %p468 = scmp.ne.s32.totalorder %s459, %s460
      %p469 = scmp.eq.s32.totalorder %s47, 0
      %p470 = por %p468, %p469
      %p471 = scmp.ne.s32.totalorder %s459, %s460
      %p472 = scmp.eq.s32.totalorder %s48, 1
      %p473 = por %p471, %p472
      %p475 = scmp.ne.s32.totalorder %s460, %s474
      %p476 = scmp.eq.s32.totalorder %s48, 0
      %p477 = por %p475, %p476
      %s478 = ssub.s32 %s49, %s61
      %s479 = ssub.s32 %s50, %s57
      %s480 = sor.u32 %s478, %s479
      %p481 = scmp.eq.s32.totalorder %s480, 0
      %s483 = sadd.s32 %s482, 1
      %s484 = scalar_select %p481, %s482, %s483
      %p487 = pneg %p481
      %p488 = scmp.eq.s32.totalorder %s42, 1
      %p489 = por %p487, %p488
      %p490 = scmp.ne.s32.totalorder %s482, %s485
      %p491 = scmp.eq.s32.totalorder %s42, 0
      %p492 = por %p490, %p491
      %p493 = scmp.ne.s32.totalorder %s482, %s485
      %p494 = scmp.eq.s32.totalorder %s47, 1
      %p495 = por %p493, %p494
      %p496 = scmp.ne.s32.totalorder %s485, %s486
      %p497 = scmp.eq.s32.totalorder %s47, 0
      %p498 = por %p496, %p497
      %p499 = scmp.ne.s32.totalorder %s485, %s486
      %p500 = scmp.eq.s32.totalorder %s48, 1
      %p501 = por %p499, %p500
      %p503 = scmp.ne.s32.totalorder %s486, %s502
      %p504 = scmp.eq.s32.totalorder %s48, 0
      %p505 = por %p503, %p504
      %p506 = scmp.le.s32.totalorder 1, %s42
      %p507 = scmp.lt.s32.totalorder %s42, 3
      %p508 = pnand %p506, %p507
      %p509 = pneg %p508
      // Predicated region
      $region9: #{tpu_custom_call.1} parent=5 // pred_check
        _
      $region10: #{tpu_custom_call.1} parent=5 // pred_check_branch
        %511 = sbr.rel (%p508) target = $region12
      $region11: #{tpu_custom_call.1} parent=5 // pred_region
        %s512 = ssub.s32 %s42, 1
        // Predicated region
        $region13: #{tpu_custom_call.1} parent=11 // pred_check
          %p513 = pneg %p155
        $region14: #{tpu_custom_call.1} parent=11 // pred_check_branch
          %515 = sbr.rel (%p513) target = $region16
        $region15: #{tpu_custom_call.1} parent=11 // pred_region
          %s517 = ssub.s32 16, 16
          %518 = vsyncadd [#allocation9], %s517
          %s520 = sshll.u32 [#allocation8], 4
          %s521 = int_to_ptr.vmem [resolvable:$true] %s520
          %523 = dma.hbm_to_vmem [thread:$0]  %s3, 16, %s521, [#allocation9]
        $region16: #{tpu_custom_call.1} parent=11 // pred_fallthru
          _
        // Predicated region
        $region17: #{tpu_custom_call.1} parent=11 // pred_check
          %p524 = pneg %p176
        $region18: #{tpu_custom_call.1} parent=11 // pred_check_branch
          %526 = sbr.rel (%p524) target = $region20
        $region19: #{tpu_custom_call.1} parent=11 // pred_region
          %s528 = ssub.s32 16, 16
          %529 = vsyncadd [#allocation9], %s528
          %s531 = sshll.u32 [#allocation10], 4
          %s532 = int_to_ptr.vmem [resolvable:$true] %s531
          %534 = dma.hbm_to_vmem [thread:$0]  %s4, 16, %s532, [#allocation9]
        $region20: #{tpu_custom_call.1} parent=11 // pred_fallthru
          _
        // Predicated region
        $region21: #{tpu_custom_call.1} parent=11 // pred_check
          %p535 = pneg %p197
        $region22: #{tpu_custom_call.1} parent=11 // pred_check_branch
          %537 = sbr.rel (%p535) target = $region24
        $region23: #{tpu_custom_call.1} parent=11 // pred_region
          %s539 = ssub.s32 256, 256
          %540 = vsyncadd [#allocation12], %s539
          %s541 = sshll.u32 [#allocation11], 4
          %s542 = int_to_ptr.vmem [resolvable:$true] %s541
          %547 = dma.hbm_to_vmem [thread:$0]  %s5, 256, %s542, [#allocation12], 64, 64, 4
        $region24: #{tpu_custom_call.1} parent=11 // pred_fallthru
          _
        // Predicated region
        $region25: #{tpu_custom_call.1} parent=11 // pred_check
          %p548 = pneg %p218
        $region26: #{tpu_custom_call.1} parent=11 // pred_check_branch
          %550 = sbr.rel (%p548) target = $region28
        $region27: #{tpu_custom_call.1} parent=11 // pred_region
          %s552 = ssub.s32 16, 16
          %553 = vsyncadd [#allocation12], %s552
          %s555 = sshll.u32 [#allocation13], 4
          %s556 = int_to_ptr.vmem [resolvable:$true] %s555
          %558 = dma.hbm_to_vmem [thread:$0]  %s6, 16, %s556, [#allocation12]
        $region28: #{tpu_custom_call.1} parent=11 // pred_fallthru
          _
        // Predicated region
        $region29: #{tpu_custom_call.1} parent=11 // pred_check
          %p559 = pneg %p239
        $region30: #{tpu_custom_call.1} parent=11 // pred_check_branch
          %561 = sbr.rel (%p559) target = $region32
        $region31: #{tpu_custom_call.1} parent=11 // pred_region
          %s563 = ssub.s32 256, 256
          %564 = vsyncadd [#allocation15], %s563
          %s565 = sshll.u32 [#allocation14], 4
          %s566 = int_to_ptr.vmem [resolvable:$true] %s565
          %571 = dma.hbm_to_vmem [thread:$0]  %s7, 256, %s566, [#allocation15], 64, 64, 4
        $region32: #{tpu_custom_call.1} parent=11 // pred_fallthru
          _
        // Predicated region
        $region33: #{tpu_custom_call.1} parent=11 // pred_check
          %p572 = pneg %p260
        $region34: #{tpu_custom_call.1} parent=11 // pred_check_branch
          %574 = sbr.rel (%p572) target = $region36
        $region35: #{tpu_custom_call.1} parent=11 // pred_region
          %s576 = ssub.s32 16, 16
          %577 = vsyncadd [#allocation15], %s576
          %s579 = sshll.u32 [#allocation16], 4
          %s580 = int_to_ptr.vmem [resolvable:$true] %s579
          %582 = dma.hbm_to_vmem [thread:$0]  %s8, 16, %s580, [#allocation15]
        $region36: #{tpu_custom_call.1} parent=11 // pred_fallthru
          _
        // Predicated region
        $region37: #{tpu_custom_call.1} parent=11 // pred_check
          %p583 = pneg %p281
        $region38: #{tpu_custom_call.1} parent=11 // pred_check_branch
          %585 = sbr.rel (%p583) target = $region40
        $region39: #{tpu_custom_call.1} parent=11 // pred_region
          %s587 = ssub.s32 256, 256
          %588 = vsyncadd [#allocation18], %s587
          %s589 = sshll.u32 [#allocation17], 4
          %s590 = int_to_ptr.vmem [resolvable:$true] %s589
          %595 = dma.hbm_to_vmem [thread:$0]  %s9, 256, %s590, [#allocation18], 64, 64, 4
        $region40: #{tpu_custom_call.1} parent=11 // pred_fallthru
          _
        // Predicated region
        $region41: #{tpu_custom_call.1} parent=11 // pred_check
          %p596 = pneg %p302
        $region42: #{tpu_custom_call.1} parent=11 // pred_check_branch
          %598 = sbr.rel (%p596) target = $region44
        $region43: #{tpu_custom_call.1} parent=11 // pred_region
          %s600 = ssub.s32 16, 16
          %601 = vsyncadd [#allocation18], %s600
          %s603 = sshll.u32 [#allocation19], 4
          %s604 = int_to_ptr.vmem [resolvable:$true] %s603
          %606 = dma.hbm_to_vmem [thread:$0]  %s10, 16, %s604, [#allocation18]
        $region44: #{tpu_custom_call.1} parent=11 // pred_fallthru
          _
        // Predicated region
        $region45: #{tpu_custom_call.1} parent=11 // pred_check
          %p607 = pneg %p323
        $region46: #{tpu_custom_call.1} parent=11 // pred_check_branch
          %609 = sbr.rel (%p607) target = $region48
        $region47: #{tpu_custom_call.1} parent=11 // pred_region
          %s611 = ssub.s32 256, 256
          %612 = vsyncadd [#allocation21], %s611
          %s613 = sshll.u32 [#allocation20], 4
          %s614 = int_to_ptr.vmem [resolvable:$true] %s613
          %619 = dma.hbm_to_vmem [thread:$0]  %s11, 256, %s614, [#allocation21], 64, 64, 4
        $region48: #{tpu_custom_call.1} parent=11 // pred_fallthru
          _
        // Predicated region
        $region49: #{tpu_custom_call.1} parent=11 // pred_check
          %p620 = pneg %p344
        $region50: #{tpu_custom_call.1} parent=11 // pred_check_branch
          %622 = sbr.rel (%p620) target = $region52
        $region51: #{tpu_custom_call.1} parent=11 // pred_region
          %s624 = ssub.s32 16, 16
          %625 = vsyncadd [#allocation21], %s624
          %s627 = sshll.u32 [#allocation22], 4
          %s628 = int_to_ptr.vmem [resolvable:$true] %s627
          %630 = dma.hbm_to_vmem [thread:$0]  %s12, 16, %s628, [#allocation21]
        $region52: #{tpu_custom_call.1} parent=11 // pred_fallthru
          _
        // Predicated region
        $region53: #{tpu_custom_call.1} parent=11 // pred_check
          %p631 = pneg %p365
        $region54: #{tpu_custom_call.1} parent=11 // pred_check_branch
          %633 = sbr.rel (%p631) target = $region56
        $region55: #{tpu_custom_call.1} parent=11 // pred_region
          %s635 = ssub.s32 16, 16
          %636 = vsyncadd [#allocation24], %s635
          %s638 = sshll.u32 [#allocation23], 4
          %s639 = int_to_ptr.vmem [resolvable:$true] %s638
          %641 = dma.hbm_to_vmem [thread:$0]  %s13, 16, %s639, [#allocation24]
        $region56: #{tpu_custom_call.1} parent=11 // pred_fallthru
          _
        // Predicated region
        $region57: #{tpu_custom_call.1} parent=11 // pred_check
          %p642 = pneg %p386
        $region58: #{tpu_custom_call.1} parent=11 // pred_check_branch
          %644 = sbr.rel (%p642) target = $region60
        $region59: #{tpu_custom_call.1} parent=11 // pred_region
          %s646 = ssub.s32 16, 16
          %647 = vsyncadd [#allocation24], %s646
          %s649 = sshll.u32 [#allocation25], 4
          %s650 = int_to_ptr.vmem [resolvable:$true] %s649
          %652 = dma.hbm_to_vmem [thread:$0]  %s14, 16, %s650, [#allocation24]
        $region60: #{tpu_custom_call.1} parent=11 // pred_fallthru
          _
        // Predicated region
        $region61: #{tpu_custom_call.1} parent=11 // pred_check
          %p653 = pneg %p407
        $region62: #{tpu_custom_call.1} parent=11 // pred_check_branch
          %655 = sbr.rel (%p653) target = $region64
        $region63: #{tpu_custom_call.1} parent=11 // pred_region
          %s657 = ssub.s32 256, 256
          %658 = vsyncadd [#allocation27], %s657
          %s659 = sshll.u32 [#allocation26], 4
          %s660 = int_to_ptr.vmem [resolvable:$true] %s659
          %665 = dma.hbm_to_vmem [thread:$0]  %s15, 256, %s660, [#allocation27], 64, 64, 4
        $region64: #{tpu_custom_call.1} parent=11 // pred_fallthru
          _
        // Predicated region
        $region65: #{tpu_custom_call.1} parent=11 // pred_check
          %p666 = pneg %p428
        $region66: #{tpu_custom_call.1} parent=11 // pred_check_branch
          %668 = sbr.rel (%p666) target = $region68
        $region67: #{tpu_custom_call.1} parent=11 // pred_region
          %s670 = ssub.s32 16, 16
          %671 = vsyncadd [#allocation27], %s670
          %s673 = sshll.u32 [#allocation28], 4
          %s674 = int_to_ptr.vmem [resolvable:$true] %s673
          %676 = dma.hbm_to_vmem [thread:$0]  %s16, 16, %s674, [#allocation27]
        $region68: #{tpu_custom_call.1} parent=11 // pred_fallthru
          _
        // Predicated region
        $region69: #{tpu_custom_call.1} parent=11 // pred_check
          %p677 = pneg %p449
        $region70: #{tpu_custom_call.1} parent=11 // pred_check_branch
          %679 = sbr.rel (%p677) target = $region72
        $region71: #{tpu_custom_call.1} parent=11 // pred_region
          %s681 = ssub.s32 512, 512
          %682 = vsyncadd [#allocation30], %s681
          %s683 = sshll.u32 [#allocation29], 4
          %s684 = int_to_ptr.vmem [resolvable:$true] %s683
          %689 = dma.hbm_to_vmem [thread:$0]  %s17, 512, %s684, [#allocation30], 64, 64, 4
        $region72: #{tpu_custom_call.1} parent=11 // pred_fallthru
          _
        // Predicated region
        $region73: #{tpu_custom_call.1} parent=11 // pred_check
          %p690 = pneg %p470
        $region74: #{tpu_custom_call.1} parent=11 // pred_check_branch
          %692 = sbr.rel (%p690) target = $region76
        $region75: #{tpu_custom_call.1} parent=11 // pred_region
          %s694 = ssub.s32 16, 16
          %695 = vsyncadd [#allocation30], %s694
          %s697 = sshll.u32 [#allocation31], 4
          %s698 = int_to_ptr.vmem [resolvable:$true] %s697
          %700 = dma.hbm_to_vmem [thread:$0]  %s18, 16, %s698, [#allocation30]
        $region76: #{tpu_custom_call.1} parent=11 // pred_fallthru
          _
      $region12: #{tpu_custom_call.1} parent=5 // pred_fallthru
        _
      %p701 = scmp.lt.s32.totalorder %s42, 2
      // Predicated region
      $region77: #{tpu_custom_call.1} parent=5 // pred_check
        %p702 = pneg %p701
      $region78: #{tpu_custom_call.1} parent=5 // pred_check_branch
        %704 = sbr.rel (%p702) target = $region80
      $region79: #{tpu_custom_call.1} parent=5 // pred_region
        // Predicated region
        $region81: #{tpu_custom_call.1} parent=79 // pred_check
          %p705 = pneg %p76
        $region82: #{tpu_custom_call.1} parent=79 // pred_check_branch
          %707 = sbr.rel (%p705) target = $region84
        $region83: #{tpu_custom_call.1} parent=79 // pred_region
          %s708 = sand.u32 %s66, 1
          %s709 = scalar_lea.sflag [#allocation3], %s708
          %s710 = sand.u32 %s66, 1
          %s711 = smul.addr %s710, 8
          %s712 = scalar_lea.vmem [#allocation2], %s711
          %s714 = ssub.s32 128, 128
          %715 = vsyncadd %s709, %s714
          %s716 = sadd.s32 %s50, %s49
          %s717 = smul.addr %s716, 128
          %s718 = scalar_lea.hbm %s0, %s717
          %s720 = sshll.u32 %s712, 4
          %s721 = int_to_ptr.vmem [resolvable:$true] %s720
          %723 = dma.hbm_to_vmem [thread:$0]  %s718, 128, %s721, %s709
        $region84: #{tpu_custom_call.1} parent=79 // pred_fallthru
          _
        // Predicated region
        $region85: #{tpu_custom_call.1} parent=79 // pred_check
          %p724 = pneg %p102
        $region86: #{tpu_custom_call.1} parent=79 // pred_check_branch
          %726 = sbr.rel (%p724) target = $region88
        $region87: #{tpu_custom_call.1} parent=79 // pred_region
          %s727 = sand.u32 %s42, 1
          %s728 = scalar_lea.sflag [#allocation6], %s727
          %s729 = sand.u32 %s92, 1
          %s730 = smul.addr %s729, 8
          %s731 = scalar_lea.vmem [#allocation5], %s730
          %s733 = ssub.s32 128, 128
          %734 = vsyncadd %s728, %s733
          %s735 = smul.addr %s49, 128
          %s736 = scalar_lea.hbm %s1, %s735
          %s738 = sshll.u32 %s731, 4
          %s739 = int_to_ptr.vmem [resolvable:$true] %s738
          %741 = dma.hbm_to_vmem [thread:$0]  %s736, 128, %s739, %s728
        $region88: #{tpu_custom_call.1} parent=79 // pred_fallthru
          _
        // Predicated region
        $region89: #{tpu_custom_call.1} parent=79 // pred_check
          %p742 = pneg %p128
        $region90: #{tpu_custom_call.1} parent=79 // pred_check_branch
          %744 = sbr.rel (%p742) target = $region92
        $region91: #{tpu_custom_call.1} parent=79 // pred_region
          %s745 = sand.u32 %s42, 1
          %s746 = scalar_lea.sflag [#allocation6], %s745
          %s747 = sand.u32 %s118, 1
          %s748 = scalar_lea.vmem [#allocation7], %s747
          %s750 = ssub.s32 16, 16
          %751 = vsyncadd %s746, %s750
          %s752 = smul.addr %s49, 16
          %s753 = scalar_lea.hbm %s2, %s752
          %s755 = sshll.u32 %s748, 4
          %s756 = int_to_ptr.vmem [resolvable:$true] %s755
          %758 = dma.hbm_to_vmem [thread:$0]  %s753, 16, %s756, %s746
        $region92: #{tpu_custom_call.1} parent=79 // pred_fallthru
          _
      $region80: #{tpu_custom_call.1} parent=5 // pred_fallthru
        _
      %p759 = scmp.le.s32.totalorder 1, %s42
      %p760 = scmp.lt.s32.totalorder %s42, 3
      %p761 = pnand %p759, %p760
      %p762 = pneg %p761
      // Predicated region
      $region93: #{tpu_custom_call.1} parent=5 // pred_check
        _
      $region94: #{tpu_custom_call.1} parent=5 // pred_check_branch
        %764 = sbr.rel (%p761) target = $region96
      $region95: #{tpu_custom_call.1} parent=5 // pred_region
        %s765 = ssub.s32 %s42, 1
        %s766 = sand.u32 %s69, 1
        %s767 = scalar_lea.sflag [#allocation3], %s766
        %s768 = sand.u32 %s69, 1
        %s769 = smul.addr %s768, 8
        %s770 = scalar_lea.vmem [#allocation2], %s769
        // Predicated region
        $region97: #{tpu_custom_call.1} parent=95 // pred_check
          %p771 = pneg %p82
        $region98: #{tpu_custom_call.1} parent=95 // pred_check_branch
          %773 = sbr.rel (%p771) target = $region100
        $region99: #{tpu_custom_call.1} parent=95 // pred_region
          %774 = dma.done %s767, 128
        $region100: #{tpu_custom_call.1} parent=95 // pred_fallthru
          _
        %s775 = sand.u32 %s47, 1
        %s776 = scalar_lea.sflag [#allocation6], %s775
        %s777 = sand.u32 %s95, 1
        %s778 = smul.addr %s777, 8
        %s779 = scalar_lea.vmem [#allocation5], %s778
        // Predicated region
        $region101: #{tpu_custom_call.1} parent=95 // pred_check
          %p780 = pneg %p108
        $region102: #{tpu_custom_call.1} parent=95 // pred_check_branch
          %782 = sbr.rel (%p780) target = $region104
        $region103: #{tpu_custom_call.1} parent=95 // pred_region
          %783 = dma.done %s776, 128
        $region104: #{tpu_custom_call.1} parent=95 // pred_fallthru
          _
        %s784 = sand.u32 %s47, 1
        %s785 = scalar_lea.sflag [#allocation6], %s784
        %s786 = sand.u32 %s121, 1
        %s787 = scalar_lea.vmem [#allocation7], %s786
        // Predicated region
        $region105: #{tpu_custom_call.1} parent=95 // pred_check
          %p788 = pneg %p134
        $region106: #{tpu_custom_call.1} parent=95 // pred_check_branch
          %790 = sbr.rel (%p788) target = $region108
        $region107: #{tpu_custom_call.1} parent=95 // pred_region
          %791 = dma.done %s785, 16
        $region108: #{tpu_custom_call.1} parent=95 // pred_fallthru
          _
        // Predicated region
        $region109: #{tpu_custom_call.1} parent=95 // pred_check
          %p792 = pneg %p155
        $region110: #{tpu_custom_call.1} parent=95 // pred_check_branch
          %794 = sbr.rel (%p792) target = $region112
        $region111: #{tpu_custom_call.1} parent=95 // pred_region
          %795 = dma.done [#allocation9], 16
        $region112: #{tpu_custom_call.1} parent=95 // pred_fallthru
          _
        // Predicated region
        $region113: #{tpu_custom_call.1} parent=95 // pred_check
          %p796 = pneg %p176
        $region114: #{tpu_custom_call.1} parent=95 // pred_check_branch
          %798 = sbr.rel (%p796) target = $region116
        $region115: #{tpu_custom_call.1} parent=95 // pred_region
          %799 = dma.done [#allocation9], 16
        $region116: #{tpu_custom_call.1} parent=95 // pred_fallthru
          _
        // Predicated region
        $region117: #{tpu_custom_call.1} parent=95 // pred_check
          %p800 = pneg %p197
        $region118: #{tpu_custom_call.1} parent=95 // pred_check_branch
          %802 = sbr.rel (%p800) target = $region120
        $region119: #{tpu_custom_call.1} parent=95 // pred_region
          %803 = dma.done [#allocation12], 256
        $region120: #{tpu_custom_call.1} parent=95 // pred_fallthru
          _
        // Predicated region
        $region121: #{tpu_custom_call.1} parent=95 // pred_check
          %p804 = pneg %p218
        $region122: #{tpu_custom_call.1} parent=95 // pred_check_branch
          %806 = sbr.rel (%p804) target = $region124
        $region123: #{tpu_custom_call.1} parent=95 // pred_region
          %807 = dma.done [#allocation12], 16
        $region124: #{tpu_custom_call.1} parent=95 // pred_fallthru
          _
        // Predicated region
        $region125: #{tpu_custom_call.1} parent=95 // pred_check
          %p808 = pneg %p239
        $region126: #{tpu_custom_call.1} parent=95 // pred_check_branch
          %810 = sbr.rel (%p808) target = $region128
        $region127: #{tpu_custom_call.1} parent=95 // pred_region
          %811 = dma.done [#allocation15], 256
        $region128: #{tpu_custom_call.1} parent=95 // pred_fallthru
          _
        // Predicated region
        $region129: #{tpu_custom_call.1} parent=95 // pred_check
          %p812 = pneg %p260
        $region130: #{tpu_custom_call.1} parent=95 // pred_check_branch
          %814 = sbr.rel (%p812) target = $region132
        $region131: #{tpu_custom_call.1} parent=95 // pred_region
          %815 = dma.done [#allocation15], 16
        $region132: #{tpu_custom_call.1} parent=95 // pred_fallthru
          _
        // Predicated region
        $region133: #{tpu_custom_call.1} parent=95 // pred_check
          %p816 = pneg %p281
        $region134: #{tpu_custom_call.1} parent=95 // pred_check_branch
          %818 = sbr.rel (%p816) target = $region136
        $region135: #{tpu_custom_call.1} parent=95 // pred_region
          %819 = dma.done [#allocation18], 256
        $region136: #{tpu_custom_call.1} parent=95 // pred_fallthru
          _
        // Predicated region
        $region137: #{tpu_custom_call.1} parent=95 // pred_check
          %p820 = pneg %p302
        $region138: #{tpu_custom_call.1} parent=95 // pred_check_branch
          %822 = sbr.rel (%p820) target = $region140
        $region139: #{tpu_custom_call.1} parent=95 // pred_region
          %823 = dma.done [#allocation18], 16
        $region140: #{tpu_custom_call.1} parent=95 // pred_fallthru
          _
        // Predicated region
        $region141: #{tpu_custom_call.1} parent=95 // pred_check
          %p824 = pneg %p323
        $region142: #{tpu_custom_call.1} parent=95 // pred_check_branch
          %826 = sbr.rel (%p824) target = $region144
        $region143: #{tpu_custom_call.1} parent=95 // pred_region
          %827 = dma.done [#allocation21], 256
        $region144: #{tpu_custom_call.1} parent=95 // pred_fallthru
          _
        // Predicated region
        $region145: #{tpu_custom_call.1} parent=95 // pred_check
          %p828 = pneg %p344
        $region146: #{tpu_custom_call.1} parent=95 // pred_check_branch
          %830 = sbr.rel (%p828) target = $region148
        $region147: #{tpu_custom_call.1} parent=95 // pred_region
          %831 = dma.done [#allocation21], 16
        $region148: #{tpu_custom_call.1} parent=95 // pred_fallthru
          _
        // Predicated region
        $region149: #{tpu_custom_call.1} parent=95 // pred_check
          %p832 = pneg %p365
        $region150: #{tpu_custom_call.1} parent=95 // pred_check_branch
          %834 = sbr.rel (%p832) target = $region152
        $region151: #{tpu_custom_call.1} parent=95 // pred_region
          %835 = dma.done [#allocation24], 16
        $region152: #{tpu_custom_call.1} parent=95 // pred_fallthru
          _
        // Predicated region
        $region153: #{tpu_custom_call.1} parent=95 // pred_check
          %p836 = pneg %p386
        $region154: #{tpu_custom_call.1} parent=95 // pred_check_branch
          %838 = sbr.rel (%p836) target = $region156
        $region155: #{tpu_custom_call.1} parent=95 // pred_region
          %839 = dma.done [#allocation24], 16
        $region156: #{tpu_custom_call.1} parent=95 // pred_fallthru
          _
        // Predicated region
        $region157: #{tpu_custom_call.1} parent=95 // pred_check
          %p840 = pneg %p407
        $region158: #{tpu_custom_call.1} parent=95 // pred_check_branch
          %842 = sbr.rel (%p840) target = $region160
        $region159: #{tpu_custom_call.1} parent=95 // pred_region
          %843 = dma.done [#allocation27], 256
        $region160: #{tpu_custom_call.1} parent=95 // pred_fallthru
          _
        // Predicated region
        $region161: #{tpu_custom_call.1} parent=95 // pred_check
          %p844 = pneg %p428
        $region162: #{tpu_custom_call.1} parent=95 // pred_check_branch
          %846 = sbr.rel (%p844) target = $region164
        $region163: #{tpu_custom_call.1} parent=95 // pred_region
          %847 = dma.done [#allocation27], 16
        $region164: #{tpu_custom_call.1} parent=95 // pred_fallthru
          _
        // Predicated region
        $region165: #{tpu_custom_call.1} parent=95 // pred_check
          %p848 = pneg %p449
        $region166: #{tpu_custom_call.1} parent=95 // pred_check_branch
          %850 = sbr.rel (%p848) target = $region168
        $region167: #{tpu_custom_call.1} parent=95 // pred_region
          %851 = dma.done [#allocation30], 512
        $region168: #{tpu_custom_call.1} parent=95 // pred_fallthru
          _
        // Predicated region
        $region169: #{tpu_custom_call.1} parent=95 // pred_check
          %p852 = pneg %p470
        $region170: #{tpu_custom_call.1} parent=95 // pred_check_branch
          %854 = sbr.rel (%p852) target = $region172
        $region171: #{tpu_custom_call.1} parent=95 // pred_region
          %855 = dma.done [#allocation30], 16
        $region172: #{tpu_custom_call.1} parent=95 // pred_fallthru
          _
        %s856 = sand.u32 %s69, 1
        %s857 = scalar_lea.sflag [#allocation3], %s856
        %s858 = sand.u32 %s69, 1
        %s859 = smul.addr %s858, 8
        %s860 = scalar_lea.vmem [#allocation2], %s859
        %p861 = pneg %p82
        %p862 = pneg %p79
        %s863 = sand.u32 %s47, 1
        %s864 = scalar_lea.sflag [#allocation6], %s863
        %s865 = sand.u32 %s95, 1
        %s866 = smul.addr %s865, 8
        %s867 = scalar_lea.vmem [#allocation5], %s866
        %p868 = pneg %p108
        %p869 = pneg %p105
        %s870 = sand.u32 %s47, 1
        %s871 = scalar_lea.sflag [#allocation6], %s870
        %s872 = sand.u32 %s121, 1
        %s873 = scalar_lea.vmem [#allocation7], %s872
        %p874 = pneg %p134
        %p875 = pneg %p131
        %p876 = pneg %p155
        %p877 = pneg %p152
        %p878 = pneg %p176
        %p879 = pneg %p173
        %p880 = pneg %p197
        %p881 = pneg %p194
        %p882 = pneg %p218
        %p883 = pneg %p215
        %p884 = pneg %p239
        %p885 = pneg %p236
        %p886 = pneg %p260
        %p887 = pneg %p257
        %p888 = pneg %p281
        %p889 = pneg %p278
        %p890 = pneg %p302
        %p891 = pneg %p299
        %p892 = pneg %p323
        %p893 = pneg %p320
        %p894 = pneg %p344
        %p895 = pneg %p341
        %p896 = pneg %p365
        %p897 = pneg %p362
        %p898 = pneg %p386
        %p899 = pneg %p383
        %p900 = pneg %p407
        %p901 = pneg %p404
        %p902 = pneg %p428
        %p903 = pneg %p425
        %p904 = pneg %p449
        %p905 = pneg %p446
        %p906 = pneg %p470
        %p907 = pneg %p467
        %p908 = pneg %p498
        %p909 = pneg %p495
        %s910 = sand.u32 %s485, 1
        %s911 = scalar_lea.sflag [#allocation4], %s910
        %s912 = sand.u32 %s485, 1
        %s913 = smul.addr %s912, 8
        %s914 = scalar_lea.vmem [#allocation32], %s913
        %v916 = vld [vmem:[%s770] sm:$0xff]
        %v917 = vld [vmem:[%s779] sm:$0xff]
        %v918 = vld [vmem:[%s787] sm:$0x1]
        %vm919 = vcmask 261120
        %v920 = vsel %vm919, %v916, 0.0
        %921 = vadd.xlane.f32.xlu0 %v920
        %v922 = vpop.xlane.xlu0 %921
        %v923 = vrcp.pop 32.0
        %v924 = vmul.f32 %v922, %v923
        %v925 = vsub.f32 %v916, %v924
        %v926 = vmul.f32 %v925, %v925
        %v927 = vsel %vm919, %v926, 0.0
        %928 = vadd.xlane.f32.xlu0 %v927
        %v929 = vpop.xlane.xlu0 %928
        %v930 = vmul.f32 %v929, 0.032258064
        %v931 = vadd.f32 %v930, 1e-06
        %v932 = vrsqrt.pop %v931
        %v933 = vmul.f32 %v925, %v932
        %v934 = vld [vmem:[#allocation8] sm:$0x1]
        %v936 = vlaneseq
        %v937 = vshrl.u32 %v936, 7
        %v938 = vsub.s32 0, %v937
        %v939 = vrot.slane %v934, %v938
        %v941 = vmul.f32 %v939, %v933
        %v942 = vld [vmem:[#allocation10] sm:$0x1]
        %v944 = vlaneseq
        %v945 = vshrl.u32 %v944, 7
        %v946 = vsub.s32 0, %v945
        %v947 = vrot.slane %v942, %v946
        %v949 = vadd.f32 %v941, %v947
        %v950 = vsel %vm919, %v917, 0.0
        %951 = vadd.xlane.f32.xlu0 %v950
        %v952 = vpop.xlane.xlu0 %951
        %v953 = vmul.f32 %v952, %v923
        %v954 = vsub.f32 %v917, %v953
        %v955 = vmul.f32 %v954, %v954
        %v956 = vsel %vm919, %v955, 0.0
        %957 = vadd.xlane.f32.xlu0 %v956
        %v958 = vpop.xlane.xlu0 %957
        %v959 = vmul.f32 %v958, 0.032258064
        %v960 = vadd.f32 %v959, 1e-06
        %v961 = vrsqrt.pop %v960
        %v962 = vmul.f32 %v954, %v961
        %v963 = vmul.f32 %v939, %v962
        %v964 = vadd.f32 %v963, %v947
        %v965 = vpack.c.bf16 %v949, %v949
        %v966 = vpack.c.bf16 %v964, %v964
        %v967 = vld [vmem:[#allocation11] sm:$0xf]
        %v968 = vld [vmem:[#allocation11 + $0x4] sm:$0xf]
        %v969 = vld [vmem:[#allocation11 + $0x8] sm:$0xf]
        %v970 = vld [vmem:[#allocation11 + $0xc] sm:$0xf]
        %v971 = vld [vmem:[#allocation13] sm:$0x1]
        %v973 = vlaneseq
        %v974 = vshrl.u32 %v973, 7
        %v975 = vsub.s32 0, %v974
        %v976 = vrot.slane %v971, %v975
        %v982 = vunpack.c.l.b16 %v967
        %v983 = vunpack.c.l.b16 %v968
        %v984 = vunpack.c.l.b16 %v969
        %v985 = vunpack.c.l.b16 %v970
        %v986 = vpack.c.b16 %v983, %v982
        %v987 = vpack.c.b16 %v985, %v984
        %v991 = vsel %vm919, %v965, 0
        %993 = vmatprep.subr.bf16.mxu0 0
        %994 = vmatpush1.bf16.msra.mxu0 %v986
        %995 = vmatprep.subr.bf16.mxu0 0
        %996 = vmatpush1.bf16.msra.mxu0 %v987
        %997 = vmatprep.subr.bf16.mxu0 0
        %998 = vmatpush1.bf16.msra.mxu0 0
        %999 = vmatprep.subr.bf16.mxu0 0
        %1000 = vmatpush1.bf16.msra.mxu0 0
        %1001 = vmatprep.subr.bf16.mxu0 0
        %1002 = vmatpush1.bf16.msra.mxu0 0
        %1003 = vmatprep.subr.bf16.mxu0 0
        %1004 = vmatpush1.bf16.msra.mxu0 0
        %1005 = vmatprep.subr.bf16.mxu0 0
        %1006 = vmatpush1.bf16.msra.mxu0 0
        %1007 = vmatprep.subr.bf16.mxu0 0
        %1008 = vmatpush1.bf16.msra.mxu0 0
        %1009 = vmatprep.subr.bf16.mxu0 0
        %1010 = vmatpush1.bf16.msra.mxu0 0
        %1011 = vmatprep.subr.bf16.mxu0 0
        %1012 = vmatpush1.bf16.msra.mxu0 0
        %1013 = vmatprep.subr.bf16.mxu0 0
        %1014 = vmatpush1.bf16.msra.mxu0 0
        %1015 = vmatprep.subr.bf16.mxu0 0
        %1016 = vmatpush1.bf16.msra.mxu0 0
        %1017 = vmatprep.subr.bf16.mxu0 0
        %1018 = vmatpush1.bf16.msra.mxu0 0
        %1019 = vmatprep.subr.bf16.mxu0 0
        %1020 = vmatpush1.bf16.msra.mxu0 0
        %1021 = vmatprep.subr.bf16.mxu0 0
        %1022 = vmatpush1.bf16.msra.mxu0 0
        %1023 = vmatprep.subr.bf16.mxu0 0
        %1024 = vmatpush1.bf16.msra.mxu0 0
        %1025 = vmatprep.mubr.bf16.mxu0 0
        %1026 = vmatmul.mubr.bf16.gmra.mrb[0].mxu0 %v991
        %v1027 = vpop.f32.mrb[0].mxu0
        %v1028 = vadd.f32 %v976, %v1027
        %v1029 = vpop.f32.mrb[0].mxu0
        %v1030 = vpop.f32.mrb[0].mxu0
        %v1031 = vpop.f32.mrb[0].mxu0
        %1032 = vdwg.mxu0
        %v1033 = vld [vmem:[#allocation14] sm:$0xf]
        %v1034 = vld [vmem:[#allocation14 + $0x4] sm:$0xf]
        %v1035 = vld [vmem:[#allocation14 + $0x8] sm:$0xf]
        %v1036 = vld [vmem:[#allocation14 + $0xc] sm:$0xf]
        %v1037 = vld [vmem:[#allocation16] sm:$0x1]
        %v1039 = vlaneseq
        %v1040 = vshrl.u32 %v1039, 7
        %v1041 = vsub.s32 0, %v1040
        %v1042 = vrot.slane %v1037, %v1041
        %v1048 = vunpack.c.l.b16 %v1033
        %v1049 = vunpack.c.l.b16 %v1034
        %v1050 = vunpack.c.l.b16 %v1035
        %v1051 = vunpack.c.l.b16 %v1036
        %v1052 = vpack.c.b16 %v1049, %v1048
        %v1053 = vpack.c.b16 %v1051, %v1050
        %v1057 = vsel %vm919, %v966, 0
        %1059 = vmatprep.subr.bf16.mxu0 0
        %1060 = vmatpush1.bf16.msra.mxu0 %v1052
        %1061 = vmatprep.subr.bf16.mxu0 0
        %1062 = vmatpush1.bf16.msra.mxu0 %v1053
        %1063 = vmatprep.subr.bf16.mxu0 0
        %1064 = vmatpush1.bf16.msra.mxu0 0
        %1065 = vmatprep.subr.bf16.mxu0 0
        %1066 = vmatpush1.bf16.msra.mxu0 0
        %1067 = vmatprep.subr.bf16.mxu0 0
        %1068 = vmatpush1.bf16.msra.mxu0 0
        %1069 = vmatprep.subr.bf16.mxu0 0
        %1070 = vmatpush1.bf16.msra.mxu0 0
        %1071 = vmatprep.subr.bf16.mxu0 0
        %1072 = vmatpush1.bf16.msra.mxu0 0
        %1073 = vmatprep.subr.bf16.mxu0 0
        %1074 = vmatpush1.bf16.msra.mxu0 0
        %1075 = vmatprep.subr.bf16.mxu0 0
        %1076 = vmatpush1.bf16.msra.mxu0 0
        %1077 = vmatprep.subr.bf16.mxu0 0
        %1078 = vmatpush1.bf16.msra.mxu0 0
        %1079 = vmatprep.subr.bf16.mxu0 0
        %1080 = vmatpush1.bf16.msra.mxu0 0
        %1081 = vmatprep.subr.bf16.mxu0 0
        %1082 = vmatpush1.bf16.msra.mxu0 0
        %1083 = vmatprep.subr.bf16.mxu0 0
        %1084 = vmatpush1.bf16.msra.mxu0 0
        %1085 = vmatprep.subr.bf16.mxu0 0
        %1086 = vmatpush1.bf16.msra.mxu0 0
        %1087 = vmatprep.subr.bf16.mxu0 0
        %1088 = vmatpush1.bf16.msra.mxu0 0
        %1089 = vmatprep.subr.bf16.mxu0 0
        %1090 = vmatpush1.bf16.msra.mxu0 0
        %1091 = vmatprep.mubr.bf16.mxu0 0
        %1092 = vmatmul.mubr.bf16.gmra.mrb[0].mxu0 %v1057
        %v1093 = vpop.f32.mrb[0].mxu0
        %v1094 = vadd.f32 %v1042, %v1093
        %v1095 = vpop.f32.mrb[0].mxu0
        %v1096 = vpop.f32.mrb[0].mxu0
        %v1097 = vpop.f32.mrb[0].mxu0
        %1098 = vdwg.mxu0
        %v1099 = vld [vmem:[#allocation17] sm:$0xf]
        %v1100 = vld [vmem:[#allocation17 + $0x4] sm:$0xf]
        %v1101 = vld [vmem:[#allocation17 + $0x8] sm:$0xf]
        %v1102 = vld [vmem:[#allocation17 + $0xc] sm:$0xf]
        %v1103 = vld [vmem:[#allocation19] sm:$0x1]
        %v1105 = vlaneseq
        %v1106 = vshrl.u32 %v1105, 7
        %v1107 = vsub.s32 0, %v1106
        %v1108 = vrot.slane %v1103, %v1107
        %v1114 = vunpack.c.l.b16 %v1099
        %v1115 = vunpack.c.l.b16 %v1100
        %v1116 = vunpack.c.l.b16 %v1101
        %v1117 = vunpack.c.l.b16 %v1102
        %v1118 = vpack.c.b16 %v1115, %v1114
        %v1119 = vpack.c.b16 %v1117, %v1116
        %1122 = vmatprep.subr.bf16.mxu0 0
        %1123 = vmatpush1.bf16.msra.mxu0 %v1118
        %1124 = vmatprep.subr.bf16.mxu0 0
        %1125 = vmatpush1.bf16.msra.mxu0 %v1119
        %1126 = vmatprep.subr.bf16.mxu0 0
        %1127 = vmatpush1.bf16.msra.mxu0 0
        %1128 = vmatprep.subr.bf16.mxu0 0
        %1129 = vmatpush1.bf16.msra.mxu0 0
        %1130 = vmatprep.subr.bf16.mxu0 0
        %1131 = vmatpush1.bf16.msra.mxu0 0
        %1132 = vmatprep.subr.bf16.mxu0 0
        %1133 = vmatpush1.bf16.msra.mxu0 0
        %1134 = vmatprep.subr.bf16.mxu0 0
        %1135 = vmatpush1.bf16.msra.mxu0 0
        %1136 = vmatprep.subr.bf16.mxu0 0
        %1137 = vmatpush1.bf16.msra.mxu0 0
        %1138 = vmatprep.subr.bf16.mxu0 0
        %1139 = vmatpush1.bf16.msra.mxu0 0
        %1140 = vmatprep.subr.bf16.mxu0 0
        %1141 = vmatpush1.bf16.msra.mxu0 0
        %1142 = vmatprep.subr.bf16.mxu0 0
        %1143 = vmatpush1.bf16.msra.mxu0 0
        %1144 = vmatprep.subr.bf16.mxu0 0
        %1145 = vmatpush1.bf16.msra.mxu0 0
        %1146 = vmatprep.subr.bf16.mxu0 0
        %1147 = vmatpush1.bf16.msra.mxu0 0
        %1148 = vmatprep.subr.bf16.mxu0 0
        %1149 = vmatpush1.bf16.msra.mxu0 0
        %1150 = vmatprep.subr.bf16.mxu0 0
        %1151 = vmatpush1.bf16.msra.mxu0 0
        %1152 = vmatprep.subr.bf16.mxu0 0
        %1153 = vmatpush1.bf16.msra.mxu0 0
        %1154 = vmatprep.mubr.bf16.mxu0 0
        %1155 = vmatmul.mubr.bf16.gmra.mrb[0].mxu0 %v1057
        %v1156 = vpop.f32.mrb[0].mxu0
        %v1157 = vadd.f32 %v1108, %v1156
        %v1158 = vpop.f32.mrb[0].mxu0
        %v1159 = vpop.f32.mrb[0].mxu0
        %v1160 = vpop.f32.mrb[0].mxu0
        %1161 = vdwg.mxu0
        %v1162 = vmul.f32 %v1028, 0.35355338
        %vm1163 = vcmp.eq.f32.partialorder %v918, 0.0
        %v1164 = vsel %vm1163, -1e+09, 0.0
        %v1165 = vpack.c.bf16 %v1162, %v1162
        %v1166 = vpack.c.bf16 %v1094, %v1094
        %v1167 = vpack.c.bf16 %v1157, %v1157
        %v1168 = vld [vmem:[#allocation20] sm:$0xf]
        %v1169 = vld [vmem:[#allocation20 + $0x4] sm:$0xf]
        %v1170 = vld [vmem:[#allocation20 + $0x8] sm:$0xf]
        %v1171 = vld [vmem:[#allocation20 + $0xc] sm:$0xf]
        %v1173 = vlaneseq
        %v1174 = vshrl.u32 %v1173, 7
        %v1175 = vsub.s32 0, %v1174
        %v1176 = vrot.slane %v1164, %v1175
        %vm1178 = vcmask 64512
        %v1180 = vsel %vm1178, %v1165, 0
        %v1183 = vsel %vm1178, %v1166, 0
        %1185 = vmatprep.subr.bf16.mxu0 0
        %1186 = vmatpush1.bf16.xpose.msra.mxu0 %v1183
        %1187 = vmatprep.subr.bf16.mxu0 0
        %1188 = vmatpush1.bf16.xpose.msra.mxu0 0
        %1189 = vmatprep.subr.bf16.mxu0 0
        %1190 = vmatpush1.bf16.xpose.msra.mxu0 0
        %1191 = vmatprep.subr.bf16.mxu0 0
        %1192 = vmatpush1.bf16.xpose.msra.mxu0 0
        %1193 = vmatprep.subr.bf16.mxu0 0
        %1194 = vmatpush1.bf16.xpose.msra.mxu0 0
        %1195 = vmatprep.subr.bf16.mxu0 0
        %1196 = vmatpush1.bf16.xpose.msra.mxu0 0
        %1197 = vmatprep.subr.bf16.mxu0 0
        %1198 = vmatpush1.bf16.xpose.msra.mxu0 0
        %1199 = vmatprep.subr.bf16.mxu0 0
        %1200 = vmatpush1.bf16.xpose.msra.mxu0 0
        %1201 = vmatprep.subr.bf16.mxu0 0
        %1202 = vmatpush1.bf16.xpose.msra.mxu0 0
        %1203 = vmatprep.subr.bf16.mxu0 0
        %1204 = vmatpush1.bf16.xpose.msra.mxu0 0
        %1205 = vmatprep.subr.bf16.mxu0 0
        %1206 = vmatpush1.bf16.xpose.msra.mxu0 0
        %1207 = vmatprep.subr.bf16.mxu0 0
        %1208 = vmatpush1.bf16.xpose.msra.mxu0 0
        %1209 = vmatprep.subr.bf16.mxu0 0
        %1210 = vmatpush1.bf16.xpose.msra.mxu0 0
        %1211 = vmatprep.subr.bf16.mxu0 0
        %1212 = vmatpush1.bf16.xpose.msra.mxu0 0
        %1213 = vmatprep.subr.bf16.mxu0 0
        %1214 = vmatpush1.bf16.xpose.msra.mxu0 0
        %1215 = vmatprep.subr.bf16.mxu0 0
        %1216 = vmatpush1.bf16.xpose.msra.mxu0 0
        %1217 = vmatprep.mubr.bf16.mxu0 0
        %1218 = vmatmul.mubr.bf16.gmra.mrb[0].mxu0 %v1180
        %v1219 = vpop.f32.mrb[0].mxu0
        %v1220 = vadd.f32 %v1176, %v1219
        %v1221 = vpop.f32.mrb[0].mxu0
        %v1222 = vpop.f32.mrb[0].mxu0
        %v1223 = vpop.f32.mrb[0].mxu0
        %1224 = vdwg.mxu0
        %v1225 = vsel %vm1178, %v1220, -inf
        %1226 = vmax.xlane.f32.xlu0 %v1225
        %v1227 = vpop.xlane.xlu0 %1226
        %v1228 = vsub.f32 %v1220, %v1227
        %v1229 = vmul.f32 %v1228, 1.442695
        %v1230 = vpow.pop %v1229
        %v1231 = vsel %vm1178, %v1230, 0.0
        %1232 = vadd.xlane.f32.xlu0 %v1231
        %v1233 = vpop.xlane.xlu0 %1232
        %v1234 = vrcp.pop %v1233
        %v1235 = vmul.f32 %v1230, %v1234
        %v1236 = vpack.c.bf16 %v1235, %v1235
        %v1238 = vsel %vm1178, %v1236, 0
        %vm1240 = vcmask 1043456
        %v1242 = vsel %vm1240, %v1167, 0
        %1244 = vmatprep.subr.bf16.mxu0 0
        %1245 = vmatpush1.bf16.msra.mxu0 %v1242
        %1246 = vmatprep.subr.bf16.mxu0 0
        %1247 = vmatpush1.bf16.msra.mxu0 0
        %1248 = vmatprep.subr.bf16.mxu0 0
        %1249 = vmatpush1.bf16.msra.mxu0 0
        %1250 = vmatprep.subr.bf16.mxu0 0
        %1251 = vmatpush1.bf16.msra.mxu0 0
        %1252 = vmatprep.subr.bf16.mxu0 0
        %1253 = vmatpush1.bf16.msra.mxu0 0
        %1254 = vmatprep.subr.bf16.mxu0 0
        %1255 = vmatpush1.bf16.msra.mxu0 0
        %1256 = vmatprep.subr.bf16.mxu0 0
        %1257 = vmatpush1.bf16.msra.mxu0 0
        %1258 = vmatprep.subr.bf16.mxu0 0
        %1259 = vmatpush1.bf16.msra.mxu0 0
        %1260 = vmatprep.subr.bf16.mxu0 0
        %1261 = vmatpush1.bf16.msra.mxu0 0
        %1262 = vmatprep.subr.bf16.mxu0 0
        %1263 = vmatpush1.bf16.msra.mxu0 0
        %1264 = vmatprep.subr.bf16.mxu0 0
        %1265 = vmatpush1.bf16.msra.mxu0 0
        %1266 = vmatprep.subr.bf16.mxu0 0
        %1267 = vmatpush1.bf16.msra.mxu0 0
        %1268 = vmatprep.subr.bf16.mxu0 0
        %1269 = vmatpush1.bf16.msra.mxu0 0
        %1270 = vmatprep.subr.bf16.mxu0 0
        %1271 = vmatpush1.bf16.msra.mxu0 0
        %1272 = vmatprep.subr.bf16.mxu0 0
        %1273 = vmatpush1.bf16.msra.mxu0 0
        %1274 = vmatprep.subr.bf16.mxu0 0
        %1275 = vmatpush1.bf16.msra.mxu0 0
        %1276 = vmatprep.mubr.bf16.mxu0 0
        %1277 = vmatmul.mubr.bf16.gmra.mrb[0].mxu0 %v1238
        %v1278 = vpop.f32.mrb[0].mxu0
        %v1279 = vadd.f32 0.0, %v1278
        %v1280 = vpop.f32.mrb[0].mxu0
        %v1281 = vpop.f32.mrb[0].mxu0
        %v1282 = vpop.f32.mrb[0].mxu0
        %1283 = vdwg.mxu0
        %v1284 = vpack.c.bf16 %v1279, %v1279
        %1286 = vrot.lane.b32.xlu0 %v1165, 120
        %v1287 = vpop.permute.xlu0 %1286
        %1289 = vrot.lane.b32.xlu0 %v1166, 120
        %v1290 = vpop.permute.xlu0 %1289
        %v1292 = vsel %vm1178, %v1287, 0
        %v1295 = vsel %vm1178, %v1290, 0
        %1297 = vmatprep.subr.bf16.mxu0 0
        %1298 = vmatpush1.bf16.xpose.msra.mxu0 %v1295
        %1299 = vmatprep.subr.bf16.mxu0 0
        %1300 = vmatpush1.bf16.xpose.msra.mxu0 0
        %1301 = vmatprep.subr.bf16.mxu0 0
        %1302 = vmatpush1.bf16.xpose.msra.mxu0 0
        %1303 = vmatprep.subr.bf16.mxu0 0
        %1304 = vmatpush1.bf16.xpose.msra.mxu0 0
        %1305 = vmatprep.subr.bf16.mxu0 0
        %1306 = vmatpush1.bf16.xpose.msra.mxu0 0
        %1307 = vmatprep.subr.bf16.mxu0 0
        %1308 = vmatpush1.bf16.xpose.msra.mxu0 0
        %1309 = vmatprep.subr.bf16.mxu0 0
        %1310 = vmatpush1.bf16.xpose.msra.mxu0 0
        %1311 = vmatprep.subr.bf16.mxu0 0
        %1312 = vmatpush1.bf16.xpose.msra.mxu0 0
        %1313 = vmatprep.subr.bf16.mxu0 0
        %1314 = vmatpush1.bf16.xpose.msra.mxu0 0
        %1315 = vmatprep.subr.bf16.mxu0 0
        %1316 = vmatpush1.bf16.xpose.msra.mxu0 0
        %1317 = vmatprep.subr.bf16.mxu0 0
        %1318 = vmatpush1.bf16.xpose.msra.mxu0 0
        %1319 = vmatprep.subr.bf16.mxu0 0
        %1320 = vmatpush1.bf16.xpose.msra.mxu0 0
        %1321 = vmatprep.subr.bf16.mxu0 0
        %1322 = vmatpush1.bf16.xpose.msra.mxu0 0
        %1323 = vmatprep.subr.bf16.mxu0 0
        %1324 = vmatpush1.bf16.xpose.msra.mxu0 0
        %1325 = vmatprep.subr.bf16.mxu0 0
        %1326 = vmatpush1.bf16.xpose.msra.mxu0 0
        %1327 = vmatprep.subr.bf16.mxu0 0
        %1328 = vmatpush1.bf16.xpose.msra.mxu0 0
        %1329 = vmatprep.mubr.bf16.mxu0 0
        %1330 = vmatmul.mubr.bf16.gmra.mrb[0].mxu0 %v1292
        %v1331 = vpop.f32.mrb[0].mxu0
        %v1332 = vadd.f32 %v1176, %v1331
        %v1333 = vpop.f32.mrb[0].mxu0
        %v1334 = vpop.f32.mrb[0].mxu0
        %v1335 = vpop.f32.mrb[0].mxu0
        %1336 = vdwg.mxu0
        %v1337 = vsel %vm1178, %v1332, -inf
        %1338 = vmax.xlane.f32.xlu0 %v1337
        %v1339 = vpop.xlane.xlu0 %1338
        %v1340 = vsub.f32 %v1332, %v1339
        %v1341 = vmul.f32 %v1340, 1.442695
        %v1342 = vpow.pop %v1341
        %v1343 = vsel %vm1178, %v1342, 0.0
        %1344 = vadd.xlane.f32.xlu0 %v1343
        %v1345 = vpop.xlane.xlu0 %1344
        %v1346 = vrcp.pop %v1345
        %v1347 = vmul.f32 %v1342, %v1346
        %v1348 = vpack.c.bf16 %v1347, %v1347
        %1350 = vrot.lane.b32.xlu0 %v1167, 120
        %v1351 = vpop.permute.xlu0 %1350
        %v1353 = vsel %vm1178, %v1348, 0
        %v1356 = vsel %vm1240, %v1351, 0
        %1358 = vmatprep.subr.bf16.mxu0 0
        %1359 = vmatpush1.bf16.msra.mxu0 %v1356
        %1360 = vmatprep.subr.bf16.mxu0 0
        %1361 = vmatpush1.bf16.msra.mxu0 0
        %1362 = vmatprep.subr.bf16.mxu0 0
        %1363 = vmatpush1.bf16.msra.mxu0 0
        %1364 = vmatprep.subr.bf16.mxu0 0
        %1365 = vmatpush1.bf16.msra.mxu0 0
        %1366 = vmatprep.subr.bf16.mxu0 0
        %1367 = vmatpush1.bf16.msra.mxu0 0
        %1368 = vmatprep.subr.bf16.mxu0 0
        %1369 = vmatpush1.bf16.msra.mxu0 0
        %1370 = vmatprep.subr.bf16.mxu0 0
        %1371 = vmatpush1.bf16.msra.mxu0 0
        %1372 = vmatprep.subr.bf16.mxu0 0
        %1373 = vmatpush1.bf16.msra.mxu0 0
        %1374 = vmatprep.subr.bf16.mxu0 0
        %1375 = vmatpush1.bf16.msra.mxu0 0
        %1376 = vmatprep.subr.bf16.mxu0 0
        %1377 = vmatpush1.bf16.msra.mxu0 0
        %1378 = vmatprep.subr.bf16.mxu0 0
        %1379 = vmatpush1.bf16.msra.mxu0 0
        %1380 = vmatprep.subr.bf16.mxu0 0
        %1381 = vmatpush1.bf16.msra.mxu0 0
        %1382 = vmatprep.subr.bf16.mxu0 0
        %1383 = vmatpush1.bf16.msra.mxu0 0
        %1384 = vmatprep.subr.bf16.mxu0 0
        %1385 = vmatpush1.bf16.msra.mxu0 0
        %1386 = vmatprep.subr.bf16.mxu0 0
        %1387 = vmatpush1.bf16.msra.mxu0 0
        %1388 = vmatprep.subr.bf16.mxu0 0
        %1389 = vmatpush1.bf16.msra.mxu0 0
        %1390 = vmatprep.mubr.bf16.mxu0 0
        %1391 = vmatmul.mubr.bf16.gmra.mrb[0].mxu0 %v1353
        %v1392 = vpop.f32.mrb[0].mxu0
        %v1393 = vadd.f32 0.0, %v1392
        %v1394 = vpop.f32.mrb[0].mxu0
        %v1395 = vpop.f32.mrb[0].mxu0
        %v1396 = vpop.f32.mrb[0].mxu0
        %1397 = vdwg.mxu0
        %v1398 = vpack.c.bf16 %v1393, %v1393
        %v1400 = vsel %vm1178, %v1398, 0
        %v1403 = vsel %vm1240, %v1169, 0
        %1405 = vmatprep.subr.bf16.mxu0 0
        %1406 = vmatpush1.bf16.msra.mxu0 %v1403
        %1407 = vmatprep.subr.bf16.mxu0 0
        %1408 = vmatpush1.bf16.msra.mxu0 0
        %1409 = vmatprep.subr.bf16.mxu0 0
        %1410 = vmatpush1.bf16.msra.mxu0 0
        %1411 = vmatprep.subr.bf16.mxu0 0
        %1412 = vmatpush1.bf16.msra.mxu0 0
        %1413 = vmatprep.subr.bf16.mxu0 0
        %1414 = vmatpush1.bf16.msra.mxu0 0
        %1415 = vmatprep.subr.bf16.mxu0 0
        %1416 = vmatpush1.bf16.msra.mxu0 0
        %1417 = vmatprep.subr.bf16.mxu0 0
        %1418 = vmatpush1.bf16.msra.mxu0 0
        %1419 = vmatprep.subr.bf16.mxu0 0
        %1420 = vmatpush1.bf16.msra.mxu0 0
        %1421 = vmatprep.subr.bf16.mxu0 0
        %1422 = vmatpush1.bf16.msra.mxu0 0
        %1423 = vmatprep.subr.bf16.mxu0 0
        %1424 = vmatpush1.bf16.msra.mxu0 0
        %1425 = vmatprep.subr.bf16.mxu0 0
        %1426 = vmatpush1.bf16.msra.mxu0 0
        %1427 = vmatprep.subr.bf16.mxu0 0
        %1428 = vmatpush1.bf16.msra.mxu0 0
        %1429 = vmatprep.subr.bf16.mxu0 0
        %1430 = vmatpush1.bf16.msra.mxu0 0
        %1431 = vmatprep.subr.bf16.mxu0 0
        %1432 = vmatpush1.bf16.msra.mxu0 0
        %1433 = vmatprep.subr.bf16.mxu0 0
        %1434 = vmatpush1.bf16.msra.mxu0 0
        %1435 = vmatprep.subr.bf16.mxu0 0
        %1436 = vmatpush1.bf16.msra.mxu0 0
        %1437 = vmatprep.mubr.bf16.mxu0 0
        %1438 = vmatmul.mubr.bf16.gmra.mrb[0].mxu0 %v1400
        %v1439 = vpop.f32.mrb[0].mxu0
        %v1440 = vadd.f32 0.0, %v1439
        %v1441 = vpop.f32.mrb[0].mxu0
        %v1442 = vpop.f32.mrb[0].mxu0
        %v1443 = vpop.f32.mrb[0].mxu0
        %1444 = vdwg.mxu0
        %v1446 = vsel %vm1178, %v1284, 0
        %v1449 = vsel %vm1240, %v1168, 0
        %1451 = vmatprep.subr.bf16.mxu0 0
        %1452 = vmatpush1.bf16.msra.mxu0 %v1449
        %1453 = vmatprep.subr.bf16.mxu0 0
        %1454 = vmatpush1.bf16.msra.mxu0 0
        %1455 = vmatprep.subr.bf16.mxu0 0
        %1456 = vmatpush1.bf16.msra.mxu0 0
        %1457 = vmatprep.subr.bf16.mxu0 0
        %1458 = vmatpush1.bf16.msra.mxu0 0
        %1459 = vmatprep.subr.bf16.mxu0 0
        %1460 = vmatpush1.bf16.msra.mxu0 0
        %1461 = vmatprep.subr.bf16.mxu0 0
        %1462 = vmatpush1.bf16.msra.mxu0 0
        %1463 = vmatprep.subr.bf16.mxu0 0
        %1464 = vmatpush1.bf16.msra.mxu0 0
        %1465 = vmatprep.subr.bf16.mxu0 0
        %1466 = vmatpush1.bf16.msra.mxu0 0
        %1467 = vmatprep.subr.bf16.mxu0 0
        %1468 = vmatpush1.bf16.msra.mxu0 0
        %1469 = vmatprep.subr.bf16.mxu0 0
        %1470 = vmatpush1.bf16.msra.mxu0 0
        %1471 = vmatprep.subr.bf16.mxu0 0
        %1472 = vmatpush1.bf16.msra.mxu0 0
        %1473 = vmatprep.subr.bf16.mxu0 0
        %1474 = vmatpush1.bf16.msra.mxu0 0
        %1475 = vmatprep.subr.bf16.mxu0 0
        %1476 = vmatpush1.bf16.msra.mxu0 0
        %1477 = vmatprep.subr.bf16.mxu0 0
        %1478 = vmatpush1.bf16.msra.mxu0 0
        %1479 = vmatprep.subr.bf16.mxu0 0
        %1480 = vmatpush1.bf16.msra.mxu0 0
        %1481 = vmatprep.subr.bf16.mxu0 0
        %1482 = vmatpush1.bf16.msra.mxu0 0
        %1483 = vmatprep.mubr.bf16.mxu0 0
        %1484 = vmatmul.mubr.bf16.gmra.mrb[0].mxu0 %v1446
        %v1485 = vpop.f32.mrb[0].mxu0
        %v1486 = vadd.f32 %v1440, %v1485
        %v1487 = vpop.f32.mrb[0].mxu0
        %v1488 = vpop.f32.mrb[0].mxu0
        %v1489 = vpop.f32.mrb[0].mxu0
        %1490 = vdwg.mxu0
        %1491 = vrot.lane.b32.xlu0 %v1165, 112
        %v1492 = vpop.permute.xlu0 %1491
        %1493 = vrot.lane.b32.xlu0 %v1166, 112
        %v1494 = vpop.permute.xlu0 %1493
        %v1496 = vsel %vm1178, %v1492, 0
        %v1499 = vsel %vm1178, %v1494, 0
        %1501 = vmatprep.subr.bf16.mxu0 0
        %1502 = vmatpush1.bf16.xpose.msra.mxu0 %v1499
        %1503 = vmatprep.subr.bf16.mxu0 0
        %1504 = vmatpush1.bf16.xpose.msra.mxu0 0
        %1505 = vmatprep.subr.bf16.mxu0 0
        %1506 = vmatpush1.bf16.xpose.msra.mxu0 0
        %1507 = vmatprep.subr.bf16.mxu0 0
        %1508 = vmatpush1.bf16.xpose.msra.mxu0 0
        %1509 = vmatprep.subr.bf16.mxu0 0
        %1510 = vmatpush1.bf16.xpose.msra.mxu0 0
        %1511 = vmatprep.subr.bf16.mxu0 0
        %1512 = vmatpush1.bf16.xpose.msra.mxu0 0
        %1513 = vmatprep.subr.bf16.mxu0 0
        %1514 = vmatpush1.bf16.xpose.msra.mxu0 0
        %1515 = vmatprep.subr.bf16.mxu0 0
        %1516 = vmatpush1.bf16.xpose.msra.mxu0 0
        %1517 = vmatprep.subr.bf16.mxu0 0
        %1518 = vmatpush1.bf16.xpose.msra.mxu0 0
        %1519 = vmatprep.subr.bf16.mxu0 0
        %1520 = vmatpush1.bf16.xpose.msra.mxu0 0
        %1521 = vmatprep.subr.bf16.mxu0 0
        %1522 = vmatpush1.bf16.xpose.msra.mxu0 0
        %1523 = vmatprep.subr.bf16.mxu0 0
        %1524 = vmatpush1.bf16.xpose.msra.mxu0 0
        %1525 = vmatprep.subr.bf16.mxu0 0
        %1526 = vmatpush1.bf16.xpose.msra.mxu0 0
        %1527 = vmatprep.subr.bf16.mxu0 0
        %1528 = vmatpush1.bf16.xpose.msra.mxu0 0
        %1529 = vmatprep.subr.bf16.mxu0 0
        %1530 = vmatpush1.bf16.xpose.msra.mxu0 0
        %1531 = vmatprep.subr.bf16.mxu0 0
        %1532 = vmatpush1.bf16.xpose.msra.mxu0 0
        %1533 = vmatprep.mubr.bf16.mxu0 0
        %1534 = vmatmul.mubr.bf16.gmra.mrb[0].mxu0 %v1496
        %v1535 = vpop.f32.mrb[0].mxu0
        %v1536 = vadd.f32 %v1176, %v1535
        %v1537 = vpop.f32.mrb[0].mxu0
        %v1538 = vpop.f32.mrb[0].mxu0
        %v1539 = vpop.f32.mrb[0].mxu0
        %1540 = vdwg.mxu0
        %v1541 = vsel %vm1178, %v1536, -inf
        %1542 = vmax.xlane.f32.xlu0 %v1541
        %v1543 = vpop.xlane.xlu0 %1542
        %v1544 = vsub.f32 %v1536, %v1543
        %v1545 = vmul.f32 %v1544, 1.442695
        %v1546 = vpow.pop %v1545
        %v1547 = vsel %vm1178, %v1546, 0.0
        %1548 = vadd.xlane.f32.xlu0 %v1547
        %v1549 = vpop.xlane.xlu0 %1548
        %v1550 = vrcp.pop %v1549
        %v1551 = vmul.f32 %v1546, %v1550
        %v1552 = vpack.c.bf16 %v1551, %v1551
        %1553 = vrot.lane.b32.xlu0 %v1167, 112
        %v1554 = vpop.permute.xlu0 %1553
        %v1556 = vsel %vm1178, %v1552, 0
        %v1559 = vsel %vm1240, %v1554, 0
        %1561 = vmatprep.subr.bf16.mxu0 0
        %1562 = vmatpush1.bf16.msra.mxu0 %v1559
        %1563 = vmatprep.subr.bf16.mxu0 0
        %1564 = vmatpush1.bf16.msra.mxu0 0
        %1565 = vmatprep.subr.bf16.mxu0 0
        %1566 = vmatpush1.bf16.msra.mxu0 0
        %1567 = vmatprep.subr.bf16.mxu0 0
        %1568 = vmatpush1.bf16.msra.mxu0 0
        %1569 = vmatprep.subr.bf16.mxu0 0
        %1570 = vmatpush1.bf16.msra.mxu0 0
        %1571 = vmatprep.subr.bf16.mxu0 0
        %1572 = vmatpush1.bf16.msra.mxu0 0
        %1573 = vmatprep.subr.bf16.mxu0 0
        %1574 = vmatpush1.bf16.msra.mxu0 0
        %1575 = vmatprep.subr.bf16.mxu0 0
        %1576 = vmatpush1.bf16.msra.mxu0 0
        %1577 = vmatprep.subr.bf16.mxu0 0
        %1578 = vmatpush1.bf16.msra.mxu0 0
        %1579 = vmatprep.subr.bf16.mxu0 0
        %1580 = vmatpush1.bf16.msra.mxu0 0
        %1581 = vmatprep.subr.bf16.mxu0 0
        %1582 = vmatpush1.bf16.msra.mxu0 0
        %1583 = vmatprep.subr.bf16.mxu0 0
        %1584 = vmatpush1.bf16.msra.mxu0 0
        %1585 = vmatprep.subr.bf16.mxu0 0
        %1586 = vmatpush1.bf16.msra.mxu0 0
        %1587 = vmatprep.subr.bf16.mxu0 0
        %1588 = vmatpush1.bf16.msra.mxu0 0
        %1589 = vmatprep.subr.bf16.mxu0 0
        %1590 = vmatpush1.bf16.msra.mxu0 0
        %1591 = vmatprep.subr.bf16.mxu0 0
        %1592 = vmatpush1.bf16.msra.mxu0 0
        %1593 = vmatprep.mubr.bf16.mxu0 0
        %1594 = vmatmul.mubr.bf16.gmra.mrb[0].mxu0 %v1556
        %v1595 = vpop.f32.mrb[0].mxu0
        %v1596 = vadd.f32 0.0, %v1595
        %v1597 = vpop.f32.mrb[0].mxu0
        %v1598 = vpop.f32.mrb[0].mxu0
        %v1599 = vpop.f32.mrb[0].mxu0
        %1600 = vdwg.mxu0
        %v1601 = vpack.c.bf16 %v1596, %v1596
        %v1603 = vsel %vm1178, %v1601, 0
        %v1606 = vsel %vm1240, %v1170, 0
        %1608 = vmatprep.subr.bf16.mxu0 0
        %1609 = vmatpush1.bf16.msra.mxu0 %v1606
        %1610 = vmatprep.subr.bf16.mxu0 0
        %1611 = vmatpush1.bf16.msra.mxu0 0
        %1612 = vmatprep.subr.bf16.mxu0 0
        %1613 = vmatpush1.bf16.msra.mxu0 0
        %1614 = vmatprep.subr.bf16.mxu0 0
        %1615 = vmatpush1.bf16.msra.mxu0 0
        %1616 = vmatprep.subr.bf16.mxu0 0
        %1617 = vmatpush1.bf16.msra.mxu0 0
        %1618 = vmatprep.subr.bf16.mxu0 0
        %1619 = vmatpush1.bf16.msra.mxu0 0
        %1620 = vmatprep.subr.bf16.mxu0 0
        %1621 = vmatpush1.bf16.msra.mxu0 0
        %1622 = vmatprep.subr.bf16.mxu0 0
        %1623 = vmatpush1.bf16.msra.mxu0 0
        %1624 = vmatprep.subr.bf16.mxu0 0
        %1625 = vmatpush1.bf16.msra.mxu0 0
        %1626 = vmatprep.subr.bf16.mxu0 0
        %1627 = vmatpush1.bf16.msra.mxu0 0
        %1628 = vmatprep.subr.bf16.mxu0 0
        %1629 = vmatpush1.bf16.msra.mxu0 0
        %1630 = vmatprep.subr.bf16.mxu0 0
        %1631 = vmatpush1.bf16.msra.mxu0 0
        %1632 = vmatprep.subr.bf16.mxu0 0
        %1633 = vmatpush1.bf16.msra.mxu0 0
        %1634 = vmatprep.subr.bf16.mxu0 0
        %1635 = vmatpush1.bf16.msra.mxu0 0
        %1636 = vmatprep.subr.bf16.mxu0 0
        %1637 = vmatpush1.bf16.msra.mxu0 0
        %1638 = vmatprep.subr.bf16.mxu0 0
        %1639 = vmatpush1.bf16.msra.mxu0 0
        %1640 = vmatprep.mubr.bf16.mxu0 0
        %1641 = vmatmul.mubr.bf16.gmra.mrb[0].mxu0 %v1603
        %v1642 = vpop.f32.mrb[0].mxu0
        %v1643 = vadd.f32 0.0, %v1642
        %v1644 = vpop.f32.mrb[0].mxu0
        %v1645 = vpop.f32.mrb[0].mxu0
        %v1646 = vpop.f32.mrb[0].mxu0
        %1647 = vdwg.mxu0
        %v1648 = vadd.f32 %v1486, %v1643
        %1649 = vrot.lane.b32.xlu0 %v1165, 104
        %v1650 = vpop.permute.xlu0 %1649
        %1651 = vrot.lane.b32.xlu0 %v1166, 104
        %v1652 = vpop.permute.xlu0 %1651
        %v1654 = vsel %vm1178, %v1650, 0
        %v1657 = vsel %vm1178, %v1652, 0
        %1659 = vmatprep.subr.bf16.mxu0 0
        %1660 = vmatpush1.bf16.xpose.msra.mxu0 %v1657
        %1661 = vmatprep.subr.bf16.mxu0 0
        %1662 = vmatpush1.bf16.xpose.msra.mxu0 0
        %1663 = vmatprep.subr.bf16.mxu0 0
        %1664 = vmatpush1.bf16.xpose.msra.mxu0 0
        %1665 = vmatprep.subr.bf16.mxu0 0
        %1666 = vmatpush1.bf16.xpose.msra.mxu0 0
        %1667 = vmatprep.subr.bf16.mxu0 0
        %1668 = vmatpush1.bf16.xpose.msra.mxu0 0
        %1669 = vmatprep.subr.bf16.mxu0 0
        %1670 = vmatpush1.bf16.xpose.msra.mxu0 0
        %1671 = vmatprep.subr.bf16.mxu0 0
        %1672 = vmatpush1.bf16.xpose.msra.mxu0 0
        %1673 = vmatprep.subr.bf16.mxu0 0
        %1674 = vmatpush1.bf16.xpose.msra.mxu0 0
        %1675 = vmatprep.subr.bf16.mxu0 0
        %1676 = vmatpush1.bf16.xpose.msra.mxu0 0
        %1677 = vmatprep.subr.bf16.mxu0 0
        %1678 = vmatpush1.bf16.xpose.msra.mxu0 0
        %1679 = vmatprep.subr.bf16.mxu0 0
        %1680 = vmatpush1.bf16.xpose.msra.mxu0 0
        %1681 = vmatprep.subr.bf16.mxu0 0
        %1682 = vmatpush1.bf16.xpose.msra.mxu0 0
        %1683 = vmatprep.subr.bf16.mxu0 0
        %1684 = vmatpush1.bf16.xpose.msra.mxu0 0
        %1685 = vmatprep.subr.bf16.mxu0 0
        %1686 = vmatpush1.bf16.xpose.msra.mxu0 0
        %1687 = vmatprep.subr.bf16.mxu0 0
        %1688 = vmatpush1.bf16.xpose.msra.mxu0 0
        %1689 = vmatprep.subr.bf16.mxu0 0
        %1690 = vmatpush1.bf16.xpose.msra.mxu0 0
        %1691 = vmatprep.mubr.bf16.mxu0 0
        %1692 = vmatmul.mubr.bf16.gmra.mrb[0].mxu0 %v1654
        %v1693 = vpop.f32.mrb[0].mxu0
        %v1694 = vadd.f32 %v1176, %v1693
        %v1695 = vpop.f32.mrb[0].mxu0
        %v1696 = vpop.f32.mrb[0].mxu0
        %v1697 = vpop.f32.mrb[0].mxu0
        %1698 = vdwg.mxu0
        %v1699 = vsel %vm1178, %v1694, -inf
        %1700 = vmax.xlane.f32.xlu0 %v1699
        %v1701 = vpop.xlane.xlu0 %1700
        %v1702 = vsub.f32 %v1694, %v1701
        %v1703 = vmul.f32 %v1702, 1.442695
        %v1704 = vpow.pop %v1703
        %v1705 = vsel %vm1178, %v1704, 0.0
        %1706 = vadd.xlane.f32.xlu0 %v1705
        %v1707 = vpop.xlane.xlu0 %1706
        %v1708 = vrcp.pop %v1707
        %v1709 = vmul.f32 %v1704, %v1708
        %v1710 = vpack.c.bf16 %v1709, %v1709
        %1711 = vrot.lane.b32.xlu0 %v1167, 104
        %v1712 = vpop.permute.xlu0 %1711
        %v1714 = vsel %vm1178, %v1710, 0
        %v1717 = vsel %vm1240, %v1712, 0
        %1719 = vmatprep.subr.bf16.mxu0 0
        %1720 = vmatpush1.bf16.msra.mxu0 %v1717
        %1721 = vmatprep.subr.bf16.mxu0 0
        %1722 = vmatpush1.bf16.msra.mxu0 0
        %1723 = vmatprep.subr.bf16.mxu0 0
        %1724 = vmatpush1.bf16.msra.mxu0 0
        %1725 = vmatprep.subr.bf16.mxu0 0
        %1726 = vmatpush1.bf16.msra.mxu0 0
        %1727 = vmatprep.subr.bf16.mxu0 0
        %1728 = vmatpush1.bf16.msra.mxu0 0
        %1729 = vmatprep.subr.bf16.mxu0 0
        %1730 = vmatpush1.bf16.msra.mxu0 0
        %1731 = vmatprep.subr.bf16.mxu0 0
        %1732 = vmatpush1.bf16.msra.mxu0 0
        %1733 = vmatprep.subr.bf16.mxu0 0
        %1734 = vmatpush1.bf16.msra.mxu0 0
        %1735 = vmatprep.subr.bf16.mxu0 0
        %1736 = vmatpush1.bf16.msra.mxu0 0
        %1737 = vmatprep.subr.bf16.mxu0 0
        %1738 = vmatpush1.bf16.msra.mxu0 0
        %1739 = vmatprep.subr.bf16.mxu0 0
        %1740 = vmatpush1.bf16.msra.mxu0 0
        %1741 = vmatprep.subr.bf16.mxu0 0
        %1742 = vmatpush1.bf16.msra.mxu0 0
        %1743 = vmatprep.subr.bf16.mxu0 0
        %1744 = vmatpush1.bf16.msra.mxu0 0
        %1745 = vmatprep.subr.bf16.mxu0 0
        %1746 = vmatpush1.bf16.msra.mxu0 0
        %1747 = vmatprep.subr.bf16.mxu0 0
        %1748 = vmatpush1.bf16.msra.mxu0 0
        %1749 = vmatprep.subr.bf16.mxu0 0
        %1750 = vmatpush1.bf16.msra.mxu0 0
        %1751 = vmatprep.mubr.bf16.mxu0 0
        %1752 = vmatmul.mubr.bf16.gmra.mrb[0].mxu0 %v1714
        %v1753 = vpop.f32.mrb[0].mxu0
        %v1754 = vadd.f32 0.0, %v1753
        %v1755 = vpop.f32.mrb[0].mxu0
        %v1756 = vpop.f32.mrb[0].mxu0
        %v1757 = vpop.f32.mrb[0].mxu0
        %1758 = vdwg.mxu0
        %v1759 = vpack.c.bf16 %v1754, %v1754
        %v1761 = vsel %vm1178, %v1759, 0
        %v1764 = vsel %vm1240, %v1171, 0
        %1766 = vmatprep.subr.bf16.mxu0 0
        %1767 = vmatpush1.bf16.msra.mxu0 %v1764
        %1768 = vmatprep.subr.bf16.mxu0 0
        %1769 = vmatpush1.bf16.msra.mxu0 0
        %1770 = vmatprep.subr.bf16.mxu0 0
        %1771 = vmatpush1.bf16.msra.mxu0 0
        %1772 = vmatprep.subr.bf16.mxu0 0
        %1773 = vmatpush1.bf16.msra.mxu0 0
        %1774 = vmatprep.subr.bf16.mxu0 0
        %1775 = vmatpush1.bf16.msra.mxu0 0
        %1776 = vmatprep.subr.bf16.mxu0 0
        %1777 = vmatpush1.bf16.msra.mxu0 0
        %1778 = vmatprep.subr.bf16.mxu0 0
        %1779 = vmatpush1.bf16.msra.mxu0 0
        %1780 = vmatprep.subr.bf16.mxu0 0
        %1781 = vmatpush1.bf16.msra.mxu0 0
        %1782 = vmatprep.subr.bf16.mxu0 0
        %1783 = vmatpush1.bf16.msra.mxu0 0
        %1784 = vmatprep.subr.bf16.mxu0 0
        %1785 = vmatpush1.bf16.msra.mxu0 0
        %1786 = vmatprep.subr.bf16.mxu0 0
        %1787 = vmatpush1.bf16.msra.mxu0 0
        %1788 = vmatprep.subr.bf16.mxu0 0
        %1789 = vmatpush1.bf16.msra.mxu0 0
        %1790 = vmatprep.subr.bf16.mxu0 0
        %1791 = vmatpush1.bf16.msra.mxu0 0
        %1792 = vmatprep.subr.bf16.mxu0 0
        %1793 = vmatpush1.bf16.msra.mxu0 0
        %1794 = vmatprep.subr.bf16.mxu0 0
        %1795 = vmatpush1.bf16.msra.mxu0 0
        %1796 = vmatprep.subr.bf16.mxu0 0
        %1797 = vmatpush1.bf16.msra.mxu0 0
        %1798 = vmatprep.mubr.bf16.mxu0 0
        %1799 = vmatmul.mubr.bf16.gmra.mrb[0].mxu0 %v1761
        %v1800 = vpop.f32.mrb[0].mxu0
        %v1801 = vadd.f32 0.0, %v1800
        %v1802 = vpop.f32.mrb[0].mxu0
        %v1803 = vpop.f32.mrb[0].mxu0
        %v1804 = vpop.f32.mrb[0].mxu0
        %1805 = vdwg.mxu0
        %v1806 = vadd.f32 %v1648, %v1801
        %v1807 = vadd.f32 %v916, %v1806
        %v1808 = vld [vmem:[#allocation22] sm:$0x1]
        %v1810 = vlaneseq
        %v1811 = vshrl.u32 %v1810, 7
        %v1812 = vsub.s32 0, %v1811
        %v1813 = vrot.slane %v1808, %v1812
        %v1815 = vadd.f32 %v1807, %v1813
        %v1816 = vsel %vm919, %v1815, 0.0
        %1817 = vadd.xlane.f32.xlu0 %v1816
        %v1818 = vpop.xlane.xlu0 %1817
        %v1819 = vmul.f32 %v1818, %v923
        %v1820 = vsub.f32 %v1815, %v1819
        %v1821 = vmul.f32 %v1820, %v1820
        %v1822 = vsel %vm919, %v1821, 0.0
        %1823 = vadd.xlane.f32.xlu0 %v1822
        %v1824 = vpop.xlane.xlu0 %1823
        %v1825 = vmul.f32 %v1824, 0.032258064
        %v1826 = vadd.f32 %v1825, 1e-06
        %v1827 = vrsqrt.pop %v1826
        %v1828 = vmul.f32 %v1820, %v1827
        %v1829 = vld [vmem:[#allocation23] sm:$0x1]
        %v1831 = vlaneseq
        %v1832 = vshrl.u32 %v1831, 7
        %v1833 = vsub.s32 0, %v1832
        %v1834 = vrot.slane %v1829, %v1833
        %v1836 = vmul.f32 %v1834, %v1828
        %v1837 = vld [vmem:[#allocation25] sm:$0x1]
        %v1839 = vlaneseq
        %v1840 = vshrl.u32 %v1839, 7
        %v1841 = vsub.s32 0, %v1840
        %v1842 = vrot.slane %v1837, %v1841
        %v1844 = vadd.f32 %v1836, %v1842
        %v1845 = vpack.c.bf16 %v1844, %v1844
        %v1846 = vld [vmem:[#allocation26] sm:$0xf]
        %v1847 = vld [vmem:[#allocation26 + $0x4] sm:$0xf]
        %v1848 = vld [vmem:[#allocation26 + $0x8] sm:$0xf]
        %v1849 = vld [vmem:[#allocation26 + $0xc] sm:$0xf]
        %v1850 = vld [vmem:[#allocation28] sm:$0x1]
        %v1852 = vlaneseq
        %v1853 = vshrl.u32 %v1852, 7
        %v1854 = vsub.s32 0, %v1853
        %v1855 = vrot.slane %v1850, %v1854
        %v1861 = vunpack.c.l.b16 %v1846
        %v1862 = vunpack.c.l.b16 %v1847
        %v1863 = vunpack.c.l.b16 %v1848
        %v1864 = vunpack.c.l.b16 %v1849
        %v1865 = vpack.c.b16 %v1862, %v1861
        %v1866 = vpack.c.b16 %v1864, %v1863
        %v1870 = vsel %vm919, %v1845, 0
        %1872 = vmatprep.subr.bf16.mxu0 0
        %1873 = vmatpush1.bf16.msra.mxu0 %v1865
        %1874 = vmatprep.subr.bf16.mxu0 0
        %1875 = vmatpush1.bf16.msra.mxu0 %v1866
        %1876 = vmatprep.subr.bf16.mxu0 0
        %1877 = vmatpush1.bf16.msra.mxu0 0
        %1878 = vmatprep.subr.bf16.mxu0 0
        %1879 = vmatpush1.bf16.msra.mxu0 0
        %1880 = vmatprep.subr.bf16.mxu0 0
        %1881 = vmatpush1.bf16.msra.mxu0 0
        %1882 = vmatprep.subr.bf16.mxu0 0
        %1883 = vmatpush1.bf16.msra.mxu0 0
        %1884 = vmatprep.subr.bf16.mxu0 0
        %1885 = vmatpush1.bf16.msra.mxu0 0
        %1886 = vmatprep.subr.bf16.mxu0 0
        %1887 = vmatpush1.bf16.msra.mxu0 0
        %1888 = vmatprep.subr.bf16.mxu0 0
        %1889 = vmatpush1.bf16.msra.mxu0 0
        %1890 = vmatprep.subr.bf16.mxu0 0
        %1891 = vmatpush1.bf16.msra.mxu0 0
        %1892 = vmatprep.subr.bf16.mxu0 0
        %1893 = vmatpush1.bf16.msra.mxu0 0
        %1894 = vmatprep.subr.bf16.mxu0 0
        %1895 = vmatpush1.bf16.msra.mxu0 0
        %1896 = vmatprep.subr.bf16.mxu0 0
        %1897 = vmatpush1.bf16.msra.mxu0 0
        %1898 = vmatprep.subr.bf16.mxu0 0
        %1899 = vmatpush1.bf16.msra.mxu0 0
        %1900 = vmatprep.subr.bf16.mxu0 0
        %1901 = vmatpush1.bf16.msra.mxu0 0
        %1902 = vmatprep.subr.bf16.mxu0 0
        %1903 = vmatpush1.bf16.msra.mxu0 0
        %1904 = vmatprep.mubr.bf16.mxu0 0
        %1905 = vmatmul.mubr.bf16.gmra.mrb[0].mxu0 %v1870
        %v1906 = vpop.f32.mrb[0].mxu0
        %v1907 = vadd.f32 %v1855, %v1906
        %v1908 = vpop.f32.mrb[0].mxu0
        %v1909 = vpop.f32.mrb[0].mxu0
        %v1910 = vpop.f32.mrb[0].mxu0
        %1911 = vdwg.mxu0
        %v1912 = vmax.f32 %v1907, 0.0
        %v1913 = vpack.c.bf16 %v1912, %v1912
        %v1914 = vld [vmem:[#allocation29] sm:$0xf]
        %v1915 = vld [vmem:[#allocation29 + $0x4] sm:$0xf]
        %v1916 = vld [vmem:[#allocation29 + $0x8] sm:$0xf]
        %v1917 = vld [vmem:[#allocation29 + $0xc] sm:$0xf]
        %v1918 = vld [vmem:[#allocation29 + $0x10] sm:$0xf]
        %v1919 = vld [vmem:[#allocation29 + $0x14] sm:$0xf]
        %v1920 = vld [vmem:[#allocation29 + $0x18] sm:$0xf]
        %v1921 = vld [vmem:[#allocation29 + $0x1c] sm:$0xf]
        %v1922 = vld [vmem:[#allocation31] sm:$0x1]
        %v1924 = vlaneseq
        %v1925 = vshrl.u32 %v1924, 7
        %v1926 = vsub.s32 0, %v1925
        %v1927 = vrot.slane %v1922, %v1926
        %v1937 = vunpack.c.l.b16 %v1914
        %v1938 = vunpack.c.l.b16 %v1915
        %v1939 = vunpack.c.l.b16 %v1916
        %v1940 = vunpack.c.l.b16 %v1917
        %v1941 = vunpack.c.l.b16 %v1918
        %v1942 = vunpack.c.l.b16 %v1919
        %v1943 = vunpack.c.l.b16 %v1920
        %v1944 = vunpack.c.l.b16 %v1921
        %v1945 = vpack.c.b16 %v1938, %v1937
        %v1946 = vpack.c.b16 %v1940, %v1939
        %v1947 = vpack.c.b16 %v1942, %v1941
        %v1948 = vpack.c.b16 %v1944, %v1943
        %vm1953 = vcmask 523264
        %v1955 = vsel %vm1953, %v1913, 0
        %1957 = vmatprep.subr.bf16.mxu0 0
        %1958 = vmatpush1.bf16.msra.mxu0 %v1945
        %1959 = vmatprep.subr.bf16.mxu0 0
        %1960 = vmatpush1.bf16.msra.mxu0 %v1946
        %1961 = vmatprep.subr.bf16.mxu0 0
        %1962 = vmatpush1.bf16.msra.mxu0 %v1947
        %1963 = vmatprep.subr.bf16.mxu0 0
        %1964 = vmatpush1.bf16.msra.mxu0 %v1948
        %1965 = vmatprep.subr.bf16.mxu0 0
        %1966 = vmatpush1.bf16.msra.mxu0 0
        %1967 = vmatprep.subr.bf16.mxu0 0
        %1968 = vmatpush1.bf16.msra.mxu0 0
        %1969 = vmatprep.subr.bf16.mxu0 0
        %1970 = vmatpush1.bf16.msra.mxu0 0
        %1971 = vmatprep.subr.bf16.mxu0 0
        %1972 = vmatpush1.bf16.msra.mxu0 0
        %1973 = vmatprep.subr.bf16.mxu0 0
        %1974 = vmatpush1.bf16.msra.mxu0 0
        %1975 = vmatprep.subr.bf16.mxu0 0
        %1976 = vmatpush1.bf16.msra.mxu0 0
        %1977 = vmatprep.subr.bf16.mxu0 0
        %1978 = vmatpush1.bf16.msra.mxu0 0
        %1979 = vmatprep.subr.bf16.mxu0 0
        %1980 = vmatpush1.bf16.msra.mxu0 0
        %1981 = vmatprep.subr.bf16.mxu0 0
        %1982 = vmatpush1.bf16.msra.mxu0 0
        %1983 = vmatprep.subr.bf16.mxu0 0
        %1984 = vmatpush1.bf16.msra.mxu0 0
        %1985 = vmatprep.subr.bf16.mxu0 0
        %1986 = vmatpush1.bf16.msra.mxu0 0
        %1987 = vmatprep.subr.bf16.mxu0 0
        %1988 = vmatpush1.bf16.msra.mxu0 0
        %1989 = vmatprep.mubr.bf16.mxu0 0
        %1990 = vmatmul.mubr.bf16.gmra.mrb[0].mxu0 %v1955
        %v1991 = vpop.f32.mrb[0].mxu0
        %v1992 = vadd.f32 %v1927, %v1991
        %v1993 = vpop.f32.mrb[0].mxu0
        %v1994 = vpop.f32.mrb[0].mxu0
        %v1995 = vpop.f32.mrb[0].mxu0
        %1996 = vdwg.mxu0
        %v1997 = vadd.f32 %v1815, %v1992
        %1998 = vst.msk [vmem:[%s914] sm:$0xff] %vm919, %v1997
        %s1999 = sand.u32 %s485, 1
        %s2000 = scalar_lea.sflag [#allocation4], %s1999
        %s2001 = sand.u32 %s485, 1
        %s2002 = smul.addr %s2001, 8
        %s2003 = scalar_lea.vmem [#allocation32], %s2002
        // Predicated region
        $region173: #{tpu_custom_call.1} parent=95 // pred_check
          %p2004 = pneg %p495
        $region174: #{tpu_custom_call.1} parent=95 // pred_check_branch
          %2006 = sbr.rel (%p2004) target = $region176
        $region175: #{tpu_custom_call.1} parent=95 // pred_region
          %s2008 = ssub.s32 128, 128
          %2009 = vsyncadd %s2000, %s2008
          %s2010 = sadd.s32 %s52, %s51
          %s2011 = smul.addr %s2010, 128
          %s2012 = scalar_lea.hbm %s19, %s2011
          %s2014 = sshll.u32 %s2003, 4
          %s2015 = int_to_ptr.vmem [resolvable:$true] %s2014
          %2017 = dma.vmem_to_hbm [thread:$0]  %s2015, 128, %s2012, %s2000
        $region176: #{tpu_custom_call.1} parent=95 // pred_fallthru
          _
      $region96: #{tpu_custom_call.1} parent=5 // pred_fallthru
        _
      %p2018 = scmp.le.s32.totalorder 2, %s42
      // Predicated region
      $region177: #{tpu_custom_call.1} parent=5 // pred_check
        %p2019 = pneg %p2018
      $region178: #{tpu_custom_call.1} parent=5 // pred_check_branch
        %2021 = sbr.rel (%p2019) target = $region180
      $region179: #{tpu_custom_call.1} parent=5 // pred_region
        %s2022 = ssub.s32 %s42, 2
        // Predicated region
        $region181: #{tpu_custom_call.1} parent=179 // pred_check
          %p2023 = pneg %p501
        $region182: #{tpu_custom_call.1} parent=179 // pred_check_branch
          %2025 = sbr.rel (%p2023) target = $region184
        $region183: #{tpu_custom_call.1} parent=179 // pred_region
          %s2026 = sand.u32 %s486, 1
          %s2027 = scalar_lea.sflag [#allocation4], %s2026
          %s2028 = sand.u32 %s486, 1
          %s2029 = smul.addr %s2028, 8
          %s2030 = scalar_lea.vmem [#allocation32], %s2029
          %2031 = dma.done %s2027, 128
        $region184: #{tpu_custom_call.1} parent=179 // pred_fallthru
          _
      $region180: #{tpu_custom_call.1} parent=5 // pred_fallthru
        _
    $region6: #{tpu_custom_call.1} parent=1 // loop_footer
      %s46 = sadd.s32 1, %s42
    $region7: #{tpu_custom_call.1} parent=1 // loop_footer_branch
      %41 = sbr.rel target = $region3
    $region8: #{tpu_custom_call.1} parent=1 // loop_exit
      _
    %2032 = vsyncpa [#allocation3], 1
    %s2033 = scalar_lea.sflag [#allocation3], 1
    %2034 = vsyncpa %s2033, 1
    %2035 = vsyncpa [#allocation6], 1
    %s2036 = scalar_lea.sflag [#allocation6], 1
    %2037 = vsyncpa %s2036, 1
    %2038 = vsyncpa [#allocation9], 1
    %2039 = vsyncpa [#allocation12], 1
    %2040 = vsyncpa [#allocation15], 1
    %2041 = vsyncpa [#allocation18], 1
    %2042 = vsyncpa [#allocation21], 1
    %2043 = vsyncpa [#allocation24], 1
    %2044 = vsyncpa [#allocation27], 1
    %2045 = vsyncpa [#allocation30], 1
    %2046 = vsyncpa [#allocation4], 1
    %s2047 = scalar_lea.sflag [#allocation4], 1
    %2048 = vsyncpa %s2047, 1

</llo_original>
